<compile_context>
chip_gen: v7x
topology: tpu7x:2x2x1
jax: 0.10.0
libtpu: 0.0.40
codegen_flags: <defaults>
</compile_context>

<pallas_src>
import functools

import jax
import jax.numpy as jnp
from jax.experimental import pallas as pl
from jax.experimental.pallas import tpu as pltpu

NEG_SLOPE = 0.2
NEG_INF = -1e30


def _masked_softmax(e, mask):
    # NEG_INF fill makes exp underflow to exactly 0 on masked entries, so no
    # extra "* adj" is needed after the exp.
    e = jnp.where(mask, e, NEG_INF)
    emax = jnp.max(e, axis=1, keepdims=True)
    p = jnp.exp(e - emax)
    denom = jnp.sum(p, axis=1, keepdims=True)
    # Guard against zero in-degree rows (module requires self-loops; this only
    # changes behavior where the reference would already be NaN/Inf).
    denom = jnp.maximum(denom, 1e-30)
    return p * pl.reciprocal(denom, approx=True)


def _hero_gat_kernel(adj_ref, fs_ref, el_ref, er_ref, g_row_ref, g_col_ref,
                     bias_ref, rst_ref, alpha_ref, *, num_heads, out_feats):
    H = num_heads
    H2 = H // 2
    F = out_feats

    # int8 adjacency -> f32 once per tile, then a >0 mask (hoisted per block).
    mask = adj_ref[...].astype(jnp.float32) > 0.0                 # (TM, N)

    # alpha[d,s] = sigmoid(ftp[s] + ftp[d]) = 1 / (1 + exp(-ftp[s]) * exp(-ftp[d]))
    # exp(-ftp) is precomputed per node in the wrapper, so this costs one VPU
    # broadcast-multiply + one EUP reciprocal instead of a (TM,N) EUP exp.
    alpha = pl.reciprocal(1.0 + g_col_ref[...] * g_row_ref[...], approx=True)  # (TM, N)
    alpha_ref[...] = alpha
    one_minus_alpha = 1.0 - alpha                                 # hoisted

    outs = []
    for h in range(H):                                            # static unroll over heads
        el = el_ref[h]                                            # (1, N)  precomputed src score
        er = er_ref[h]                                            # (TM, 1) precomputed dst score
        e = er + el                                               # e[d, s] = el[s] + er[d]
        e = jnp.where(e >= 0, e, NEG_SLOPE * e)                   # LeakyReLU
        if h < H2:
            a = _masked_softmax(e, mask) * alpha                  # gated by alpha
        else:
            a = _masked_softmax(-e, mask) * one_minus_alpha       # negated scores, 1-alpha gate
        # Head-major projected features: fs_ref[h] is a free leading-axis index
        # (no sub-vreg lane slicing of a (N, H*F) block).
        outs.append(jnp.dot(a, fs_ref[h], preferred_element_type=jnp.float32))  # (TM, F)

    # Single lane-dense (TM, H*F) store; per-head narrow vst.msk stores avoided.
    rst_ref[...] = jnp.concatenate(outs, axis=1) + bias_ref[...]

    # TODO(synk): attn-blending arg (a*0.95 + attn*0.05), get_attention edge-attn
    # outputs and the residual path are not exposed in this eval-mode forward.


def _vmem_limit_bytes():
    """Generation-aware scoped-VMEM limit (~3/4 of physical, capped at 100 MiB)."""
    try:
        cap = int(pltpu.get_tpu_info().vmem_capacity_bytes)
    except Exception:
        cap = 64 * 1024 * 1024        # conservative fallback (v7x-sized)
    return int(min(100 * 1024 * 1024, cap * 3 // 4))


def _pick_tile_m(n, stream_row_bytes, resident_bytes, budget_bytes):
    """Largest multiple-of-32 divisor of n whose double-buffered streamed tiles
    (plus resident full blocks) fit the VMEM budget; prefers an even tile
    count (v7x: two TensorCores). Falls back to the full array."""
    cands = [t for t in range(32, n, 32) if n % t == 0]

    def fits(t):
        # Pallas double-buffers by default: 2x streamed tiles, 2x resident blocks.
        # (Resident blocks could be single-buffered with pl.Buffered(1) on
        #  memory-tight v7x configs.)
        return 2 * resident_bytes + 2 * t * stream_row_bytes <= budget_bytes

    for require_even in (True, False):
        best = None
        for t in cands:
            if fits(t) and (not require_even or (n // t) % 2 == 0):
                best = t
        if best is not None:
            return best
    return n


def hero_gat_forward(feat, adj_dst_src, alpha_hidden, params, *,
                     num_heads, out_feats, tile_m=None):
    N, Din = feat.shape
    H, F = num_heads, out_feats
    HF = H * F

    # -------- grid-invariant src-side precompute (wrapper / XLA, runs ONCE) --------
    # Fused H-head projection, stored head-major so per-head slicing in the
    # kernel is a free leading-axis index.
    fs_hm = jnp.einsum("nd,hdf->hnf", feat, params["w"]).astype(jnp.float32)   # (H, N, F)

    attn_src = jnp.concatenate([params["attn_l"], params["attn_ln"]], axis=0)  # (H, F)
    attn_dst = jnp.concatenate([params["attn_r"], params["attn_rn"]], axis=0)  # (H, F)
    el = jnp.einsum("hnf,hf->hn", fs_hm, attn_src)[:, None, :]                 # (H, 1, N)
    er = jnp.einsum("hnf,hf->hn", fs_hm, attn_dst)[:, :, None]                 # (H, N, 1)

    # alp MLP: Dropout(eval) -> Linear -> ELU -> Linear -> Sigmoid, then exp(-ftp)
    z = alpha_hidden @ params["aw1"] + params["ab1"]
    z = jnp.where(z > 0, z, jnp.exp(z) - 1.0)                                  # ELU
    ftp = jax.nn.sigmoid(z @ params["aw2"].T + params["ab2"])                  # (N, 1)
    g = jnp.exp(-ftp).astype(jnp.float32)                                      # (N, 1)
    g_row = g.reshape(1, N)                                                    # src view
    g_col = g                                                                  # dst view (row-tiled)

    bias_flat = params["bias"].reshape(1, HF)

    # adj only acts as a >0 mask — keep it int8 at the kernel boundary.
    adj_i8 = adj_dst_src if adj_dst_src.dtype == jnp.int8 \
        else (adj_dst_src != 0).astype(jnp.int8)

    # -------- tiling / VMEM budget --------
    vmem_limit = _vmem_limit_bytes()
    if tile_m is None:
        stream_row_bytes = N * 1 + N * 4 + HF * 4 + H * 4 + 4     # adj + alpha + rst + er + g_col
        resident_bytes = 4 * (H * N * F + H * N + N + HF)         # fs + el + g_row + bias
        tile_m = _pick_tile_m(N, stream_row_bytes, resident_bytes, vmem_limit // 2)
    assert N % tile_m == 0, "tile_m must divide N"
    assert tile_m == N or tile_m % 32 == 0, "tile_m must be a multiple of 32 (int8 adj) or full N"
    grid = (N // tile_m,)

    def full(shape):
        return pl.BlockSpec(shape, lambda i, _nd=len(shape): (0,) * _nd)

    row2 = lambda cols: pl.BlockSpec((tile_m, cols), lambda i: (i, 0))
    row3 = lambda lead, cols: pl.BlockSpec((lead, tile_m, cols), lambda i: (0, i, 0))

    kernel = functools.partial(_hero_gat_kernel, num_heads=H, out_feats=F)

    rst_flat, alpha = pl.pallas_call(
        kernel,
        out_shape=(jax.ShapeDtypeStruct((N, HF), jnp.float32),
                   jax.ShapeDtypeStruct((N, N), jnp.float32)),
        grid=grid,
        in_specs=[
            row2(N),                 # adj        (int8 mask, dst rows streamed)
            full((H, N, F)),         # fs_hm      (projected src feats, resident)
            full((H, 1, N)),         # el         (src scores, resident)
            row3(H, 1),              # er         (dst scores, row-tiled view)
            full((1, N)),            # exp(-ftp)  (src view, resident)
            row2(1),                 # exp(-ftp)  (dst view, row-tiled)
            full((1, HF)),           # bias
        ],
        out_specs=(
            row2(HF),                # rst  (lane-dense (TM, H*F) blocks)
            row2(N),                 # alpha
        ),
        compiler_params=pltpu.CompilerParams(
            dimension_semantics=("parallel",),       # v7x: split row tiles over 2 TCs
            vmem_limit_bytes=vmem_limit,
        ),
    )(adj_i8, fs_hm, el, er, g_row, g_col, bias_flat)

    # Free reshape in the wrapper (output already lane-dense / head-contiguous).
    return rst_flat.reshape(N, H, F), alpha


def reference_forward(feat, adj, ah, p, *, num_heads, out_feats):
    """Pure-JAX reference (same dense formulation as the PyTorch module)."""
    H, F = num_heads, out_feats
    H2 = H // 2
    z = ah @ p["aw1"] + p["ab1"]
    z = jnp.where(z > 0, z, jnp.exp(z) - 1.0)
    ftp = jax.nn.sigmoid(z @ p["aw2"].T + p["ab2"])               # (N, 1)
    alpha = jax.nn.sigmoid(ftp + ftp.T)                           # (N, N)
    outs = []
    for hh in range(H):
        fs = feat @ p["w"][hh]
        if hh < H2:
            a_s, a_d, gate, neg = p["attn_l"][hh], p["attn_r"][hh], alpha, False
        else:
            a_s, a_d, gate, neg = p["attn_ln"][hh - H2], p["attn_rn"][hh - H2], 1.0 - alpha, True
        el = fs @ a_s
        er = fs @ a_d
        e = er[:, None] + el[None, :]                             # [dst, src]
        e = jnp.where(e >= 0, e, NEG_SLOPE * e)
        if neg:
            e = -e
        e = jnp.where(adj > 0, e, NEG_INF)
        w = jnp.exp(e - e.max(axis=1, keepdims=True)) * adj
        a = (w / w.sum(axis=1, keepdims=True)) * gate
        outs.append(a @ fs + p["bias"][hh][None, :])
    return jnp.stack(outs, axis=1), alpha


def init_params(key, in_feats, out_feats, alp_feats, num_heads):
    H, F, A = num_heads, out_feats, alp_feats
    H2 = H // 2
    ks = jax.random.split(key, 8)
    gain = jnp.sqrt(2.0)
    std_fc = gain * jnp.sqrt(2.0 / (in_feats + H * F))
    std_attn = gain * jnp.sqrt(2.0 / (H2 + F))
    return {
        # fc weight stored per-head, already transposed for x @ W: (H, Din, F)
        "w": std_fc * jax.random.normal(ks[0], (H, in_feats, F), jnp.float32),
        "attn_l": std_attn * jax.random.normal(ks[1], (H2, F), jnp.float32),
        "attn_r": std_attn * jax.random.normal(ks[2], (H2, F), jnp.float32),
        "attn_ln": std_attn * jax.random.normal(ks[3], (H2, F), jnp.float32),
        "attn_rn": std_attn * jax.random.normal(ks[4], (H2, F), jnp.float32),
        "bias": jnp.zeros((H, F), jnp.float32),
        # alp MLP: Linear(A, F) then Linear(F, 1)
        "aw1": 0.3 * jax.random.normal(ks[5], (A, F), jnp.float32),
        "ab1": 0.05 * jax.random.normal(ks[6], (1, F), jnp.float32),
        "aw2": 0.3 * jax.random.normal(ks[7], (1, F), jnp.float32),   # PyTorch Linear(F,1).weight shape
        "ab2": jnp.zeros((1, 1), jnp.float32),
    }


if __name__ == "__main__":
    N, in_feats, out_feats, alp_feats, num_heads = 64, 32, 16, 8, 4

    key = jax.random.PRNGKey(0)
    k_feat, k_ah, k_adj, k_par = jax.random.split(key, 4)

    feat = jax.random.normal(k_feat, (N, in_feats), jnp.float32)
    alpha_hidden = jax.random.normal(k_ah, (N, alp_feats), jnp.float32)
    # random directed graph with self-loops (no zero in-degree); adj[dst, src]
    adj_f32 = (jax.random.uniform(k_adj, (N, N)) < 0.3).astype(jnp.float32)
    adj_f32 = jnp.maximum(adj_f32, jnp.eye(N, dtype=jnp.float32))
    adj_i8 = adj_f32.astype(jnp.int8)            # int8 mask at the kernel boundary

    params = init_params(k_par, in_feats, out_feats, alp_feats, num_heads)

    rst, alpha = hero_gat_forward(feat, adj_i8, alpha_hidden, params,
                                  num_heads=num_heads, out_feats=out_feats)
    rst = jax.block_until_ready(rst)
    alpha = jax.block_until_ready(alpha)

    rst_ref, alpha_ref = reference_forward(feat, adj_f32, alpha_hidden, params,
                                           num_heads=num_heads, out_feats=out_feats)

    assert rst.shape == (N, num_heads, out_feats) and alpha.shape == (N, N)
    assert bool(jnp.all(jnp.isfinite(rst))) and bool(jnp.all(jnp.isfinite(alpha)))
    assert bool(jnp.allclose(rst, rst_ref, rtol=2e-2, atol=2e-2))
    assert bool(jnp.allclose(alpha, alpha_ref, rtol=2e-2, atol=2e-2))

    print("KERNEL_OK")
</pallas_src>

<mosaic_0001>
module attributes {stable_mosaic.version = 11 : i64} {
  func.func @_hero_gat_kernel(%arg0: i32, %arg1: memref<32x64xi8, #tpu.memory_space<vmem>>, %arg2: memref<4x64x16xf32, #tpu.memory_space<vmem>>, %arg3: memref<4x1x64xf32, #tpu.memory_space<vmem>>, %arg4: memref<4x32x1xf32, #tpu.memory_space<vmem>>, %arg5: memref<1x64xf32, #tpu.memory_space<vmem>>, %arg6: memref<32x1xf32, #tpu.memory_space<vmem>>, %arg7: memref<1x64xf32, #tpu.memory_space<vmem>>, %arg8: memref<32x64xf32, #tpu.memory_space<vmem>>, %arg9: memref<32x64xf32, #tpu.memory_space<vmem>>) attributes {dimension_semantics = [#tpu.dimension_semantics<parallel>], iteration_bounds = array<i64: 2>, scalar_prefetch = 0 : i64, scratch_operands = 0 : i64, tpu.core_type = #tpu.core_type<tc>, window_params = [{transform_indices = @transform_0, window_bounds = array<i64: 32, 64>}, {pipeline_mode = #tpu.pipeline_mode<synchronous>, transform_indices = @transform_1, window_bounds = array<i64: 4, 64, 16>}, {pipeline_mode = #tpu.pipeline_mode<synchronous>, transform_indices = @transform_2, window_bounds = array<i64: 4, 1, 64>}, {transform_indices = @transform_3, window_bounds = array<i64: 4, 32, 1>}, {pipeline_mode = #tpu.pipeline_mode<synchronous>, transform_indices = @transform_4, window_bounds = array<i64: 1, 64>}, {transform_indices = @transform_5, window_bounds = array<i64: 32, 1>}, {pipeline_mode = #tpu.pipeline_mode<synchronous>, transform_indices = @transform_6, window_bounds = array<i64: 1, 64>}, {transform_indices = @transform_7, window_bounds = array<i64: 32, 64>}, {transform_indices = @transform_8, window_bounds = array<i64: 32, 64>}]} {
    %c0 = arith.constant 0 : index
    %c0_0 = arith.constant 0 : index
    %0 = vector.load %arg1[%c0, %c0_0] : memref<32x64xi8, #tpu.memory_space<vmem>>, vector<32x64xi8>
    %1 = arith.sitofp %0 : vector<32x64xi8> to vector<32x64xf32>
    %cst = arith.constant 0.000000e+00 : f32
    %2 = vector.broadcast %cst : f32 to vector<32x64xf32>
    %3 = arith.cmpf ogt, %1, %2 : vector<32x64xf32>
    %c0_1 = arith.constant 0 : index
    %c0_2 = arith.constant 0 : index
    %4 = vector.load %arg6[%c0_1, %c0_2] : memref<32x1xf32, #tpu.memory_space<vmem>>, vector<32x1xf32>
    %c0_3 = arith.constant 0 : index
    %c0_4 = arith.constant 0 : index
    %5 = vector.load %arg5[%c0_3, %c0_4] : memref<1x64xf32, #tpu.memory_space<vmem>>, vector<1x64xf32>
    %6 = vector.broadcast %4 : vector<32x1xf32> to vector<32x64xf32>
    %7 = vector.broadcast %5 : vector<1x64xf32> to vector<32x64xf32>
    %8 = arith.mulf %6, %7 : vector<32x64xf32>
    %cst_5 = arith.constant 1.000000e+00 : f32
    %9 = vector.broadcast %cst_5 : f32 to vector<32x64xf32>
    %10 = arith.addf %9, %8 : vector<32x64xf32>
    %11 = tpu.reciprocal %10 {approx = true} : vector<32x64xf32> -> vector<32x64xf32>
    %c0_6 = arith.constant 0 : index
    %c0_7 = arith.constant 0 : index
    %12 = vector.load %arg9[%c0_6, %c0_7] : memref<32x64xf32, #tpu.memory_space<vmem>>, vector<32x64xf32>
    tpu.vector_store %arg9[%c0_6, %c0_7], %11 {strides = array<i32>} : memref<32x64xf32, #tpu.memory_space<vmem>>, vector<32x64xf32>,
    %cst_8 = arith.constant 1.000000e+00 : f32
    %13 = vector.broadcast %cst_8 : f32 to vector<32x64xf32>
    %14 = arith.subf %13, %11 : vector<32x64xf32>
    %c0_9 = arith.constant 0 : index
    %c0_10 = arith.constant 0 : index
    %c0_11 = arith.constant 0 : index
    %15 = vector.load %arg3[%c0_9, %c0_10, %c0_11] : memref<4x1x64xf32, #tpu.memory_space<vmem>>, vector<1x1x64xf32>
    %16 = vector.shape_cast %15 : vector<1x1x64xf32> to vector<1x64xf32>
    %c0_12 = arith.constant 0 : index
    %c0_13 = arith.constant 0 : index
    %c0_14 = arith.constant 0 : index
    %17 = vector.load %arg4[%c0_12, %c0_13, %c0_14] : memref<4x32x1xf32, #tpu.memory_space<vmem>>, vector<1x32x1xf32>
    %18 = vector.shape_cast %17 : vector<1x32x1xf32> to vector<32x1xf32>
    %19 = vector.broadcast %18 : vector<32x1xf32> to vector<32x64xf32>
    %20 = vector.broadcast %16 : vector<1x64xf32> to vector<32x64xf32>
    %21 = arith.addf %19, %20 : vector<32x64xf32>
    %cst_15 = arith.constant 0.000000e+00 : f32
    %22 = vector.broadcast %cst_15 : f32 to vector<32x64xf32>
    %23 = arith.cmpf oge, %21, %22 : vector<32x64xf32>
    %cst_16 = arith.constant 2.000000e-01 : f32
    %24 = vector.broadcast %cst_16 : f32 to vector<32x64xf32>
    %25 = arith.mulf %24, %21 : vector<32x64xf32>
    %26 = arith.select %23, %21, %25 : vector<32x64xi1>, vector<32x64xf32>
    %cst_17 = arith.constant -1.000000e+30 : f32
    %27 = vector.broadcast %cst_17 : f32 to vector<32x64xf32>
    %28 = arith.select %3, %26, %27 : vector<32x64xi1>, vector<32x64xf32>
    %cst_18 = arith.constant dense<0xFF800000> : vector<32xf32>
    %29 = vector.multi_reduction <maximumf>, %28, %cst_18 [1] : vector<32x64xf32> to vector<32xf32>
    %30 = vector.shape_cast %29 : vector<32xf32> to vector<32x1xf32>
    %31 = vector.broadcast %30 : vector<32x1xf32> to vector<32x64xf32>
    %32 = arith.subf %28, %31 : vector<32x64xf32>
    %33 = math.exp %32 : vector<32x64xf32>
    %cst_19 = arith.constant dense<0.000000e+00> : vector<32xf32>
    %34 = vector.multi_reduction <add>, %33, %cst_19 [1] : vector<32x64xf32> to vector<32xf32>
    %35 = vector.shape_cast %34 : vector<32xf32> to vector<32x1xf32>
    %cst_20 = arith.constant 1.000000e-30 : f32
    %36 = vector.broadcast %cst_20 : f32 to vector<32x1xf32>
    %37 = arith.maximumf %35, %36 : vector<32x1xf32>
    %38 = tpu.reciprocal %37 {approx = true} : vector<32x1xf32> -> vector<32x1xf32>
    %39 = vector.broadcast %38 : vector<32x1xf32> to vector<32x64xf32>
    %40 = arith.mulf %33, %39 : vector<32x64xf32>
    %41 = arith.mulf %40, %11 : vector<32x64xf32>
    %c0_21 = arith.constant 0 : index
    %c0_22 = arith.constant 0 : index
    %c0_23 = arith.constant 0 : index
    %42 = vector.load %arg2[%c0_21, %c0_22, %c0_23] : memref<4x64x16xf32, #tpu.memory_space<vmem>>, vector<1x64x16xf32>
    %43 = vector.shape_cast %42 : vector<1x64x16xf32> to vector<64x16xf32>
    %cst_24 = arith.constant dense<0.000000e+00> : vector<32x16xf32>
    %44 = tpu.matmul %41, %43, %cst_24 {dimension_numbers = #tpu.dot_dimension_numbers<[1], [0], [0], [1], [0, 0, 1, 1], [], []>} : vector<32x64xf32>, vector<64x16xf32>, vector<32x16xf32> -> vector<32x16xf32>
    %c1 = arith.constant 1 : index
    %c0_25 = arith.constant 0 : index
    %c0_26 = arith.constant 0 : index
    %45 = vector.load %arg3[%c1, %c0_25, %c0_26] : memref<4x1x64xf32, #tpu.memory_space<vmem>>, vector<1x1x64xf32>
    %46 = vector.shape_cast %45 : vector<1x1x64xf32> to vector<1x64xf32>
    %c1_27 = arith.constant 1 : index
    %c0_28 = arith.constant 0 : index
    %c0_29 = arith.constant 0 : index
    %47 = vector.load %arg4[%c1_27, %c0_28, %c0_29] : memref<4x32x1xf32, #tpu.memory_space<vmem>>, vector<1x32x1xf32>
    %48 = vector.shape_cast %47 : vector<1x32x1xf32> to vector<32x1xf32>
    %49 = vector.broadcast %48 : vector<32x1xf32> to vector<32x64xf32>
    %50 = vector.broadcast %46 : vector<1x64xf32> to vector<32x64xf32>
    %51 = arith.addf %49, %50 : vector<32x64xf32>
    %cst_30 = arith.constant 0.000000e+00 : f32
    %52 = vector.broadcast %cst_30 : f32 to vector<32x64xf32>
    %53 = arith.cmpf oge, %51, %52 : vector<32x64xf32>
    %cst_31 = arith.constant 2.000000e-01 : f32
    %54 = vector.broadcast %cst_31 : f32 to vector<32x64xf32>
    %55 = arith.mulf %54, %51 : vector<32x64xf32>
    %56 = arith.select %53, %51, %55 : vector<32x64xi1>, vector<32x64xf32>
    %cst_32 = arith.constant -1.000000e+30 : f32
    %57 = vector.broadcast %cst_32 : f32 to vector<32x64xf32>
    %58 = arith.select %3, %56, %57 : vector<32x64xi1>, vector<32x64xf32>
    %cst_33 = arith.constant dense<0xFF800000> : vector<32xf32>
    %59 = vector.multi_reduction <maximumf>, %58, %cst_33 [1] : vector<32x64xf32> to vector<32xf32>
    %60 = vector.shape_cast %59 : vector<32xf32> to vector<32x1xf32>
    %61 = vector.broadcast %60 : vector<32x1xf32> to vector<32x64xf32>
    %62 = arith.subf %58, %61 : vector<32x64xf32>
    %63 = math.exp %62 : vector<32x64xf32>
    %cst_34 = arith.constant dense<0.000000e+00> : vector<32xf32>
    %64 = vector.multi_reduction <add>, %63, %cst_34 [1] : vector<32x64xf32> to vector<32xf32>
    %65 = vector.shape_cast %64 : vector<32xf32> to vector<32x1xf32>
    %cst_35 = arith.constant 1.000000e-30 : f32
    %66 = vector.broadcast %cst_35 : f32 to vector<32x1xf32>
    %67 = arith.maximumf %65, %66 : vector<32x1xf32>
    %68 = tpu.reciprocal %67 {approx = true} : vector<32x1xf32> -> vector<32x1xf32>
    %69 = vector.broadcast %68 : vector<32x1xf32> to vector<32x64xf32>
    %70 = arith.mulf %63, %69 : vector<32x64xf32>
    %71 = arith.mulf %70, %11 : vector<32x64xf32>
    %c1_36 = arith.constant 1 : index
    %c0_37 = arith.constant 0 : index
    %c0_38 = arith.constant 0 : index
    %72 = vector.load %arg2[%c1_36, %c0_37, %c0_38] : memref<4x64x16xf32, #tpu.memory_space<vmem>>, vector<1x64x16xf32>
    %73 = vector.shape_cast %72 : vector<1x64x16xf32> to vector<64x16xf32>
    %cst_39 = arith.constant dense<0.000000e+00> : vector<32x16xf32>
    %74 = tpu.matmul %71, %73, %cst_39 {dimension_numbers = #tpu.dot_dimension_numbers<[1], [0], [0], [1], [0, 0, 1, 1], [], []>} : vector<32x64xf32>, vector<64x16xf32>, vector<32x16xf32> -> vector<32x16xf32>
    %c2 = arith.constant 2 : index
    %c0_40 = arith.constant 0 : index
    %c0_41 = arith.constant 0 : index
    %75 = vector.load %arg3[%c2, %c0_40, %c0_41] : memref<4x1x64xf32, #tpu.memory_space<vmem>>, vector<1x1x64xf32>
    %76 = vector.shape_cast %75 : vector<1x1x64xf32> to vector<1x64xf32>
    %c2_42 = arith.constant 2 : index
    %c0_43 = arith.constant 0 : index
    %c0_44 = arith.constant 0 : index
    %77 = vector.load %arg4[%c2_42, %c0_43, %c0_44] : memref<4x32x1xf32, #tpu.memory_space<vmem>>, vector<1x32x1xf32>
    %78 = vector.shape_cast %77 : vector<1x32x1xf32> to vector<32x1xf32>
    %79 = vector.broadcast %78 : vector<32x1xf32> to vector<32x64xf32>
    %80 = vector.broadcast %76 : vector<1x64xf32> to vector<32x64xf32>
    %81 = arith.addf %79, %80 : vector<32x64xf32>
    %cst_45 = arith.constant 0.000000e+00 : f32
    %82 = vector.broadcast %cst_45 : f32 to vector<32x64xf32>
    %83 = arith.cmpf oge, %81, %82 : vector<32x64xf32>
    %cst_46 = arith.constant 2.000000e-01 : f32
    %84 = vector.broadcast %cst_46 : f32 to vector<32x64xf32>
    %85 = arith.mulf %84, %81 : vector<32x64xf32>
    %86 = arith.select %83, %81, %85 : vector<32x64xi1>, vector<32x64xf32>
    %cst_47 = arith.constant 0.000000e+00 : f32
    %87 = vector.broadcast %cst_47 : f32 to vector<32x64xf32>
    %88 = arith.subf %87, %86 : vector<32x64xf32>
    %cst_48 = arith.constant -1.000000e+30 : f32
    %89 = vector.broadcast %cst_48 : f32 to vector<32x64xf32>
    %90 = arith.select %3, %88, %89 : vector<32x64xi1>, vector<32x64xf32>
    %cst_49 = arith.constant dense<0xFF800000> : vector<32xf32>
    %91 = vector.multi_reduction <maximumf>, %90, %cst_49 [1] : vector<32x64xf32> to vector<32xf32>
    %92 = vector.shape_cast %91 : vector<32xf32> to vector<32x1xf32>
    %93 = vector.broadcast %92 : vector<32x1xf32> to vector<32x64xf32>
    %94 = arith.subf %90, %93 : vector<32x64xf32>
    %95 = math.exp %94 : vector<32x64xf32>
    %cst_50 = arith.constant dense<0.000000e+00> : vector<32xf32>
    %96 = vector.multi_reduction <add>, %95, %cst_50 [1] : vector<32x64xf32> to vector<32xf32>
    %97 = vector.shape_cast %96 : vector<32xf32> to vector<32x1xf32>
    %cst_51 = arith.constant 1.000000e-30 : f32
    %98 = vector.broadcast %cst_51 : f32 to vector<32x1xf32>
    %99 = arith.maximumf %97, %98 : vector<32x1xf32>
    %100 = tpu.reciprocal %99 {approx = true} : vector<32x1xf32> -> vector<32x1xf32>
    %101 = vector.broadcast %100 : vector<32x1xf32> to vector<32x64xf32>
    %102 = arith.mulf %95, %101 : vector<32x64xf32>
    %103 = arith.mulf %102, %14 : vector<32x64xf32>
    %c2_52 = arith.constant 2 : index
    %c0_53 = arith.constant 0 : index
    %c0_54 = arith.constant 0 : index
    %104 = vector.load %arg2[%c2_52, %c0_53, %c0_54] : memref<4x64x16xf32, #tpu.memory_space<vmem>>, vector<1x64x16xf32>
    %105 = vector.shape_cast %104 : vector<1x64x16xf32> to vector<64x16xf32>
    %cst_55 = arith.constant dense<0.000000e+00> : vector<32x16xf32>
    %106 = tpu.matmul %103, %105, %cst_55 {dimension_numbers = #tpu.dot_dimension_numbers<[1], [0], [0], [1], [0, 0, 1, 1], [], []>} : vector<32x64xf32>, vector<64x16xf32>, vector<32x16xf32> -> vector<32x16xf32>
    %c3 = arith.constant 3 : index
    %c0_56 = arith.constant 0 : index
    %c0_57 = arith.constant 0 : index
    %107 = vector.load %arg3[%c3, %c0_56, %c0_57] : memref<4x1x64xf32, #tpu.memory_space<vmem>>, vector<1x1x64xf32>
    %108 = vector.shape_cast %107 : vector<1x1x64xf32> to vector<1x64xf32>
    %c3_58 = arith.constant 3 : index
    %c0_59 = arith.constant 0 : index
    %c0_60 = arith.constant 0 : index
    %109 = vector.load %arg4[%c3_58, %c0_59, %c0_60] : memref<4x32x1xf32, #tpu.memory_space<vmem>>, vector<1x32x1xf32>
    %110 = vector.shape_cast %109 : vector<1x32x1xf32> to vector<32x1xf32>
    %111 = vector.broadcast %110 : vector<32x1xf32> to vector<32x64xf32>
    %112 = vector.broadcast %108 : vector<1x64xf32> to vector<32x64xf32>
    %113 = arith.addf %111, %112 : vector<32x64xf32>
    %cst_61 = arith.constant 0.000000e+00 : f32
    %114 = vector.broadcast %cst_61 : f32 to vector<32x64xf32>
    %115 = arith.cmpf oge, %113, %114 : vector<32x64xf32>
    %cst_62 = arith.constant 2.000000e-01 : f32
    %116 = vector.broadcast %cst_62 : f32 to vector<32x64xf32>
    %117 = arith.mulf %116, %113 : vector<32x64xf32>
    %118 = arith.select %115, %113, %117 : vector<32x64xi1>, vector<32x64xf32>
    %cst_63 = arith.constant 0.000000e+00 : f32
    %119 = vector.broadcast %cst_63 : f32 to vector<32x64xf32>
    %120 = arith.subf %119, %118 : vector<32x64xf32>
    %cst_64 = arith.constant -1.000000e+30 : f32
    %121 = vector.broadcast %cst_64 : f32 to vector<32x64xf32>
    %122 = arith.select %3, %120, %121 : vector<32x64xi1>, vector<32x64xf32>
    %cst_65 = arith.constant dense<0xFF800000> : vector<32xf32>
    %123 = vector.multi_reduction <maximumf>, %122, %cst_65 [1] : vector<32x64xf32> to vector<32xf32>
    %124 = vector.shape_cast %123 : vector<32xf32> to vector<32x1xf32>
    %125 = vector.broadcast %124 : vector<32x1xf32> to vector<32x64xf32>
    %126 = arith.subf %122, %125 : vector<32x64xf32>
    %127 = math.exp %126 : vector<32x64xf32>
    %cst_66 = arith.constant dense<0.000000e+00> : vector<32xf32>
    %128 = vector.multi_reduction <add>, %127, %cst_66 [1] : vector<32x64xf32> to vector<32xf32>
    %129 = vector.shape_cast %128 : vector<32xf32> to vector<32x1xf32>
    %cst_67 = arith.constant 1.000000e-30 : f32
    %130 = vector.broadcast %cst_67 : f32 to vector<32x1xf32>
    %131 = arith.maximumf %129, %130 : vector<32x1xf32>
    %132 = tpu.reciprocal %131 {approx = true} : vector<32x1xf32> -> vector<32x1xf32>
    %133 = vector.broadcast %132 : vector<32x1xf32> to vector<32x64xf32>
    %134 = arith.mulf %127, %133 : vector<32x64xf32>
    %135 = arith.mulf %134, %14 : vector<32x64xf32>
    %c3_68 = arith.constant 3 : index
    %c0_69 = arith.constant 0 : index
    %c0_70 = arith.constant 0 : index
    %136 = vector.load %arg2[%c3_68, %c0_69, %c0_70] : memref<4x64x16xf32, #tpu.memory_space<vmem>>, vector<1x64x16xf32>
    %137 = vector.shape_cast %136 : vector<1x64x16xf32> to vector<64x16xf32>
    %cst_71 = arith.constant dense<0.000000e+00> : vector<32x16xf32>
    %138 = tpu.matmul %135, %137, %cst_71 {dimension_numbers = #tpu.dot_dimension_numbers<[1], [0], [0], [1], [0, 0, 1, 1], [], []>} : vector<32x64xf32>, vector<64x16xf32>, vector<32x16xf32> -> vector<32x16xf32>
    %139 = tpu.concatenate %44, %74, %106, %138 in 1 : vector<32x16xf32>, vector<32x16xf32>, vector<32x16xf32>, vector<32x16xf32> -> vector<32x64xf32>
    %c0_72 = arith.constant 0 : index
    %c0_73 = arith.constant 0 : index
    %140 = vector.load %arg7[%c0_72, %c0_73] : memref<1x64xf32, #tpu.memory_space<vmem>>, vector<1x64xf32>
    %141 = vector.broadcast %140 : vector<1x64xf32> to vector<32x64xf32>
    %142 = arith.addf %139, %141 : vector<32x64xf32>
    %c0_74 = arith.constant 0 : index
    %c0_75 = arith.constant 0 : index
    %143 = vector.load %arg8[%c0_74, %c0_75] : memref<32x64xf32, #tpu.memory_space<vmem>>, vector<32x64xf32>
    tpu.vector_store %arg8[%c0_74, %c0_75], %142 {strides = array<i32>} : memref<32x64xf32, #tpu.memory_space<vmem>>, vector<32x64xf32>,
    return
  }
  func.func @transform_0(%arg0: i32) -> (i32, i32) {
    %c0_i32 = arith.constant 0 : i32
    %c0_i32_0 = arith.constant 0 : i32
    return %arg0, %c0_i32 : i32, i32
  }
  func.func @transform_1(%arg0: i32) -> (i32, i32, i32) {
    %c0_i32 = arith.constant 0 : i32
    %c0_i32_0 = arith.constant 0 : i32
    %c0_i32_1 = arith.constant 0 : i32
    %c0_i32_2 = arith.constant 0 : i32
    return %c0_i32, %c0_i32_0, %c0_i32_1 : i32, i32, i32
  }
  func.func @transform_2(%arg0: i32) -> (i32, i32, i32) {
    %c0_i32 = arith.constant 0 : i32
    %c0_i32_0 = arith.constant 0 : i32
    %c0_i32_1 = arith.constant 0 : i32
    %c0_i32_2 = arith.constant 0 : i32
    return %c0_i32, %c0_i32_0, %c0_i32_1 : i32, i32, i32
  }
  func.func @transform_3(%arg0: i32) -> (i32, i32, i32) {
    %c0_i32 = arith.constant 0 : i32
    %c0_i32_0 = arith.constant 0 : i32
    %c0_i32_1 = arith.constant 0 : i32
    return %c0_i32, %arg0, %c0_i32_0 : i32, i32, i32
  }
  func.func @transform_4(%arg0: i32) -> (i32, i32) {
    %c0_i32 = arith.constant 0 : i32
    %c0_i32_0 = arith.constant 0 : i32
    %c0_i32_1 = arith.constant 0 : i32
    return %c0_i32, %c0_i32_0 : i32, i32
  }
  func.func @transform_5(%arg0: i32) -> (i32, i32) {
    %c0_i32 = arith.constant 0 : i32
    %c0_i32_0 = arith.constant 0 : i32
    return %arg0, %c0_i32 : i32, i32
  }
  func.func @transform_6(%arg0: i32) -> (i32, i32) {
    %c0_i32 = arith.constant 0 : i32
    %c0_i32_0 = arith.constant 0 : i32
    %c0_i32_1 = arith.constant 0 : i32
    return %c0_i32, %c0_i32_0 : i32, i32
  }
  func.func @transform_7(%arg0: i32) -> (i32, i32) {
    %c0_i32 = arith.constant 0 : i32
    %c0_i32_0 = arith.constant 0 : i32
    return %arg0, %c0_i32 : i32, i32
  }
  func.func @transform_8(%arg0: i32) -> (i32, i32) {
    %c0_i32 = arith.constant 0 : i32
    %c0_i32_0 = arith.constant 0 : i32
    return %arg0, %c0_i32 : i32, i32
  }
}

</mosaic_0001>

<llo_original>
// kernel: tpu_custom_call.1
$region0: #{tpu_custom_call.1}
  #allocation0 [shape = 'u32[]', space=smem, size = 0x4, offset = 0x4, fixed_abs, tag = 'smem constant byte address 0x4 - core index']
  #allocation1 [shape = 'u32[144,128]{1,0:T(1,128)}', space=vmem, size = 0x12000, scoped, tag = 'internal scratch']
  %s0 = inlined_call_operand.vmem [shape: s8[64,64], index: 0, kind: input, shape index: {}]
  %s1 = inlined_call_operand.vmem [shape: f32[4,64,16], index: 1, kind: input, shape index: {}]
  %s2 = inlined_call_operand.vmem [shape: f32[4,1,64], index: 2, kind: input, shape index: {}]
  %s3 = inlined_call_operand.vmem [shape: f32[4,64,1], index: 3, kind: input, shape index: {}]
  %s4 = inlined_call_operand.vmem [shape: f32[1,64], index: 4, kind: input, shape index: {}]
  %s5 = inlined_call_operand.vmem [shape: f32[64,1], index: 5, kind: input, shape index: {}]
  %s6 = inlined_call_operand.vmem [shape: f32[1,64], index: 6, kind: input, shape index: {}]
  %s7 = inlined_call_operand.hbm [shape: f32[64,64], index: 7, kind: output, shape index: {0}]
  %s8 = inlined_call_operand.hbm [shape: f32[64,64], index: 8, kind: output, shape index: {1}]
  %9 = xla_tuple %s7, %s8
  %s10 = sld [smem:[#allocation0]]
  $region107: #{tpu_custom_call.1} parent=0
    _
  %s12 = ssub.s32 1, %s10
  %s13 = scalar_select 0, %s12, %s10
  $region1: #{tpu_custom_call.1} parent=0
    #allocation2 [shape = 'u8[131072]{0}', space=vmem, size = 0x20000, scoped, tag = 'input window, operand 3']
    #allocation3 [shape = 'u8[32768]{0}', space=vmem, size = 0x8000, scoped, tag = 'output window, operand 0']
    #allocation4 [shape = 's32[2]{0}', space=sflag, size = 0x8, scoped, tag = 'scoped memory for tpu_custom_call.1']
    #allocation5 [shape = 'u8[32768]{0}', space=vmem, size = 0x8000, scoped, tag = 'output window, operand 1']
    #allocation6 [shape = 's32[2]{0}', space=sflag, size = 0x8, scoped, tag = 'scoped memory for tpu_custom_call.1']
    %14 = vsyncpa [#allocation4], 0
    %s15 = scalar_lea.sflag [#allocation4], 1
    %16 = vsyncpa %s15, 0
    %17 = vsyncpa [#allocation6], 0
    %s18 = scalar_lea.sflag [#allocation6], 1
    %19 = vsyncpa %s18, 0
    loop: start=0, step=1, limit=4
    $region2: #{tpu_custom_call.1} parent=1 // loop_pre_header
      _
    $region3: #{tpu_custom_call.1} parent=1 // loop_header
      %s21 = sphi 0, %s25
      %p22 = scmp.ge.s32.totalorder %s21, 4
      %s31 = sphi 0, %s33
      %s34 = sphi 0, %s31
      %s35 = sphi 0, %s34
      %s51 = sphi 0, %s35
      %s55 = sphi 0, %s55
      %s57 = sphi 0, %s55
      %s58 = sphi 0, %s57
      %s72 = sphi 0, %s58
      %s76 = sphi 0, %s76
      %s78 = sphi 0, %s76
      %s79 = sphi 0, %s78
      %s93 = sphi 0, %s79
      %s99 = sphi 0, %s101
      %s102 = sphi 0, %s99
      %s103 = sphi 0, %s102
      %s119 = sphi 0, %s103
      %s123 = sphi 0, %s123
      %s125 = sphi 0, %s123
      %s126 = sphi 0, %s125
      %s140 = sphi 0, %s126
      %s146 = sphi 0, %s148
      %s149 = sphi 0, %s146
      %s150 = sphi 0, %s149
      %s166 = sphi 0, %s150
      %s170 = sphi 0, %s170
      %s172 = sphi 0, %s170
      %s173 = sphi 0, %s172
      %s187 = sphi 0, %s173
      %s193 = sphi 0, %s195
      %s196 = sphi 0, %s193
      %s197 = sphi 0, %s196
      %s213 = sphi 0, %s197
      %s219 = sphi 0, %s221
      %s222 = sphi 0, %s219
      %s223 = sphi 0, %s222
      %s239 = sphi 0, %s223
    $region4: #{tpu_custom_call.1} parent=1 // loop_header_branch
      %24 = sbr.rel (%p22) target = $region8
    $region5: #{tpu_custom_call.1} parent=1 // loop_body
      %s26 = ssub.s32 %s21, 1
      %s27 = ssub.s32 %s21, 2
      %s28 = sadd.s32 %s21, 1
      %s29 = ssub.s32 %s21, %s28
      %p30 = scmp.eq.s32.totalorder %s29, 0
      %s32 = sadd.s32 %s31, 1
      %s33 = scalar_select %p30, %s31, %s32
      %p36 = pneg %p30
      %p37 = scmp.eq.s32.totalorder %s21, 1
      %p38 = por %p36, %p37
      %p39 = scmp.ne.s32.totalorder %s31, %s34
      %p40 = scmp.eq.s32.totalorder %s21, 0
      %p41 = por %p39, %p40
      %p42 = scmp.ne.s32.totalorder %s31, %s34
      %p43 = scmp.eq.s32.totalorder %s26, 1
      %p44 = por %p42, %p43
      %p45 = scmp.ne.s32.totalorder %s34, %s35
      %p46 = scmp.eq.s32.totalorder %s26, 0
      %p47 = por %p45, %p46
      %p48 = scmp.ne.s32.totalorder %s34, %s35
      %p49 = scmp.eq.s32.totalorder %s27, 1
      %p50 = por %p48, %p49
      %p52 = scmp.ne.s32.totalorder %s35, %s51
      %p53 = scmp.eq.s32.totalorder %s27, 0
      %p54 = por %p52, %p53
      %s56 = sadd.s32 %s55, 1
      %p59 = scmp.eq.s32.totalorder %s21, 1
      %p60 = scmp.ne.s32.totalorder %s55, %s57
      %p61 = scmp.eq.s32.totalorder %s21, 0
      %p62 = por %p60, %p61
      %p63 = scmp.ne.s32.totalorder %s55, %s57
      %p64 = scmp.eq.s32.totalorder %s26, 1
      %p65 = por %p63, %p64
      %p66 = scmp.ne.s32.totalorder %s57, %s58
      %p67 = scmp.eq.s32.totalorder %s26, 0
      %p68 = por %p66, %p67
      %p69 = scmp.ne.s32.totalorder %s57, %s58
      %p70 = scmp.eq.s32.totalorder %s27, 1
      %p71 = por %p69, %p70
      %p73 = scmp.ne.s32.totalorder %s58, %s72
      %p74 = scmp.eq.s32.totalorder %s27, 0
      %p75 = por %p73, %p74
      %s77 = sadd.s32 %s76, 1
      %p80 = scmp.eq.s32.totalorder %s21, 1
      %p81 = scmp.ne.s32.totalorder %s76, %s78
      %p82 = scmp.eq.s32.totalorder %s21, 0
      %p83 = por %p81, %p82
      %p84 = scmp.ne.s32.totalorder %s76, %s78
      %p85 = scmp.eq.s32.totalorder %s26, 1
      %p86 = por %p84, %p85
      %p87 = scmp.ne.s32.totalorder %s78, %s79
      %p88 = scmp.eq.s32.totalorder %s26, 0
      %p89 = por %p87, %p88
      %p90 = scmp.ne.s32.totalorder %s78, %s79
      %p91 = scmp.eq.s32.totalorder %s27, 1
      %p92 = por %p90, %p91
      %p94 = scmp.ne.s32.totalorder %s79, %s93
      %p95 = scmp.eq.s32.totalorder %s27, 0
      %p96 = por %p94, %p95
      %s97 = ssub.s32 %s21, %s28
      %p98 = scmp.eq.s32.totalorder %s97, 0
      %s100 = sadd.s32 %s99, 1
      %s101 = scalar_select %p98, %s99, %s100
      %p104 = pneg %p98
      %p105 = scmp.eq.s32.totalorder %s21, 1
      %p106 = por %p104, %p105
      %p107 = scmp.ne.s32.totalorder %s99, %s102
      %p108 = scmp.eq.s32.totalorder %s21, 0
      %p109 = por %p107, %p108
      %p110 = scmp.ne.s32.totalorder %s99, %s102
      %p111 = scmp.eq.s32.totalorder %s26, 1
      %p112 = por %p110, %p111
      %p113 = scmp.ne.s32.totalorder %s102, %s103
      %p114 = scmp.eq.s32.totalorder %s26, 0
      %p115 = por %p113, %p114
      %p116 = scmp.ne.s32.totalorder %s102, %s103
      %p117 = scmp.eq.s32.totalorder %s27, 1
      %p118 = por %p116, %p117
      %p120 = scmp.ne.s32.totalorder %s103, %s119
      %p121 = scmp.eq.s32.totalorder %s27, 0
      %p122 = por %p120, %p121
      %s124 = sadd.s32 %s123, 1
      %p127 = scmp.eq.s32.totalorder %s21, 1
      %p128 = scmp.ne.s32.totalorder %s123, %s125
      %p129 = scmp.eq.s32.totalorder %s21, 0
      %p130 = por %p128, %p129
      %p131 = scmp.ne.s32.totalorder %s123, %s125
      %p132 = scmp.eq.s32.totalorder %s26, 1
      %p133 = por %p131, %p132
      %p134 = scmp.ne.s32.totalorder %s125, %s126
      %p135 = scmp.eq.s32.totalorder %s26, 0
      %p136 = por %p134, %p135
      %p137 = scmp.ne.s32.totalorder %s125, %s126
      %p138 = scmp.eq.s32.totalorder %s27, 1
      %p139 = por %p137, %p138
      %p141 = scmp.ne.s32.totalorder %s126, %s140
      %p142 = scmp.eq.s32.totalorder %s27, 0
      %p143 = por %p141, %p142
      %s144 = ssub.s32 %s21, %s28
      %p145 = scmp.eq.s32.totalorder %s144, 0
      %s147 = sadd.s32 %s146, 1
      %s148 = scalar_select %p145, %s146, %s147
      %p151 = pneg %p145
      %p152 = scmp.eq.s32.totalorder %s21, 1
      %p153 = por %p151, %p152
      %p154 = scmp.ne.s32.totalorder %s146, %s149
      %p155 = scmp.eq.s32.totalorder %s21, 0
      %p156 = por %p154, %p155
      %p157 = scmp.ne.s32.totalorder %s146, %s149
      %p158 = scmp.eq.s32.totalorder %s26, 1
      %p159 = por %p157, %p158
      %p160 = scmp.ne.s32.totalorder %s149, %s150
      %p161 = scmp.eq.s32.totalorder %s26, 0
      %p162 = por %p160, %p161
      %p163 = scmp.ne.s32.totalorder %s149, %s150
      %p164 = scmp.eq.s32.totalorder %s27, 1
      %p165 = por %p163, %p164
      %p167 = scmp.ne.s32.totalorder %s150, %s166
      %p168 = scmp.eq.s32.totalorder %s27, 0
      %p169 = por %p167, %p168
      %s171 = sadd.s32 %s170, 1
      %p174 = scmp.eq.s32.totalorder %s21, 1
      %p175 = scmp.ne.s32.totalorder %s170, %s172
      %p176 = scmp.eq.s32.totalorder %s21, 0
      %p177 = por %p175, %p176
      %p178 = scmp.ne.s32.totalorder %s170, %s172
      %p179 = scmp.eq.s32.totalorder %s26, 1
      %p180 = por %p178, %p179
      %p181 = scmp.ne.s32.totalorder %s172, %s173
      %p182 = scmp.eq.s32.totalorder %s26, 0
      %p183 = por %p181, %p182
      %p184 = scmp.ne.s32.totalorder %s172, %s173
      %p185 = scmp.eq.s32.totalorder %s27, 1
      %p186 = por %p184, %p185
      %p188 = scmp.ne.s32.totalorder %s173, %s187
      %p189 = scmp.eq.s32.totalorder %s27, 0
      %p190 = por %p188, %p189
      %s191 = ssub.s32 %s21, %s28
      %p192 = scmp.eq.s32.totalorder %s191, 0
      %s194 = sadd.s32 %s193, 1
      %s195 = scalar_select %p192, %s193, %s194
      %p198 = pneg %p192
      %p199 = scmp.eq.s32.totalorder %s21, 1
      %p200 = por %p198, %p199
      %p201 = scmp.ne.s32.totalorder %s193, %s196
      %p202 = scmp.eq.s32.totalorder %s21, 0
      %p203 = por %p201, %p202
      %p204 = scmp.ne.s32.totalorder %s193, %s196
      %p205 = scmp.eq.s32.totalorder %s26, 1
      %p206 = por %p204, %p205
      %p207 = scmp.ne.s32.totalorder %s196, %s197
      %p208 = scmp.eq.s32.totalorder %s26, 0
      %p209 = por %p207, %p208
      %p210 = scmp.ne.s32.totalorder %s196, %s197
      %p211 = scmp.eq.s32.totalorder %s27, 1
      %p212 = por %p210, %p211
      %p214 = scmp.ne.s32.totalorder %s197, %s213
      %p215 = scmp.eq.s32.totalorder %s27, 0
      %p216 = por %p214, %p215
      %s217 = ssub.s32 %s21, %s28
      %p218 = scmp.eq.s32.totalorder %s217, 0
      %s220 = sadd.s32 %s219, 1
      %s221 = scalar_select %p218, %s219, %s220
      %p224 = pneg %p218
      %p225 = scmp.eq.s32.totalorder %s21, 1
      %p226 = por %p224, %p225
      %p227 = scmp.ne.s32.totalorder %s219, %s222
      %p228 = scmp.eq.s32.totalorder %s21, 0
      %p229 = por %p227, %p228
      %p230 = scmp.ne.s32.totalorder %s219, %s222
      %p231 = scmp.eq.s32.totalorder %s26, 1
      %p232 = por %p230, %p231
      %p233 = scmp.ne.s32.totalorder %s222, %s223
      %p234 = scmp.eq.s32.totalorder %s26, 0
      %p235 = por %p233, %p234
      %p236 = scmp.ne.s32.totalorder %s222, %s223
      %p237 = scmp.eq.s32.totalorder %s27, 1
      %p238 = por %p236, %p237
      %p240 = scmp.ne.s32.totalorder %s223, %s239
      %p241 = scmp.eq.s32.totalorder %s27, 0
      %p242 = por %p240, %p241
      %p243 = scmp.le.s32.totalorder 1, %s21
      %p244 = scmp.lt.s32.totalorder %s21, 3
      %p245 = pnand %p243, %p244
      %p246 = pneg %p245
      // Predicated region
      $region9: #{tpu_custom_call.1} parent=5 // pred_check
        _
      $region10: #{tpu_custom_call.1} parent=5 // pred_check_branch
        %248 = sbr.rel (%p245) target = $region12
      $region11: #{tpu_custom_call.1} parent=5 // pred_region
        %s249 = ssub.s32 %s21, 1
        // Predicated region
        $region13: #{tpu_custom_call.1} parent=11 // pred_check
          %p250 = pneg %p68
        $region14: #{tpu_custom_call.1} parent=11 // pred_check_branch
          %252 = sbr.rel (%p250) target = $region16
        $region15: #{tpu_custom_call.1} parent=11 // pred_region
          _
        $region16: #{tpu_custom_call.1} parent=11 // pred_fallthru
          _
        // Predicated region
        $region17: #{tpu_custom_call.1} parent=11 // pred_check
          %p253 = pneg %p89
        $region18: #{tpu_custom_call.1} parent=11 // pred_check_branch
          %255 = sbr.rel (%p253) target = $region20
        $region19: #{tpu_custom_call.1} parent=11 // pred_region
          _
        $region20: #{tpu_custom_call.1} parent=11 // pred_fallthru
          _
        // Predicated region
        $region21: #{tpu_custom_call.1} parent=11 // pred_check
          %p256 = pneg %p136
        $region22: #{tpu_custom_call.1} parent=11 // pred_check_branch
          %258 = sbr.rel (%p256) target = $region24
        $region23: #{tpu_custom_call.1} parent=11 // pred_region
          _
        $region24: #{tpu_custom_call.1} parent=11 // pred_fallthru
          _
        // Predicated region
        $region25: #{tpu_custom_call.1} parent=11 // pred_check
          %p259 = pneg %p183
        $region26: #{tpu_custom_call.1} parent=11 // pred_check_branch
          %261 = sbr.rel (%p259) target = $region28
        $region27: #{tpu_custom_call.1} parent=11 // pred_region
          _
        $region28: #{tpu_custom_call.1} parent=11 // pred_fallthru
          _
      $region12: #{tpu_custom_call.1} parent=5 // pred_fallthru
        _
      %p262 = scmp.lt.s32.totalorder %s21, 2
      // Predicated region
      $region29: #{tpu_custom_call.1} parent=5 // pred_check
        %p263 = pneg %p262
      $region30: #{tpu_custom_call.1} parent=5 // pred_check_branch
        %265 = sbr.rel (%p263) target = $region32
      $region31: #{tpu_custom_call.1} parent=5 // pred_region
        // Predicated region
        $region33: #{tpu_custom_call.1} parent=31 // pred_check
          %p266 = pneg %p41
        $region34: #{tpu_custom_call.1} parent=31 // pred_check_branch
          %268 = sbr.rel (%p266) target = $region36
        $region35: #{tpu_custom_call.1} parent=31 // pred_region
          %p269 = scmp.lt.s32.totalorder %s21, 1
          %s270 = scalar_select %p269, %s21, 1
          %s271 = smul.addr %s270, 8
          %s272 = scalar_lea.vmem %s0, %s271
        $region36: #{tpu_custom_call.1} parent=31 // pred_fallthru
          _
        // Predicated region
        $region37: #{tpu_custom_call.1} parent=31 // pred_check
          %p273 = pneg %p109
        $region38: #{tpu_custom_call.1} parent=31 // pred_check_branch
          %275 = sbr.rel (%p273) target = $region40
        $region39: #{tpu_custom_call.1} parent=31 // pred_region
          %s276 = sand.u32 %s99, 1
          %s277 = sand.u32 %s99, 1
          %s278 = smul.addr %s277, 128
          %s279 = scalar_lea.vmem [#allocation2], %s278
          %s280 = smul.u32 4, %s21
          %s281 = smul.addr %s280, 8
          %s282 = scalar_lea.vmem %s3, %s281
          // Predicated region
          $region41: #{tpu_custom_call.1} parent=39 // pred_check
            _
          $region42: #{tpu_custom_call.1} parent=39 // pred_check_branch
            %284 = sbr.rel (0) target = $region44
          $region43: #{tpu_custom_call.1} parent=39 // pred_region
            // Predicated region
            $region45: #{tpu_custom_call.1} parent=43 // pred_check
              _
            $region46: #{tpu_custom_call.1} parent=43 // pred_check_branch
              %286 = sbr.rel (0) target = $region48
            $region47: #{tpu_custom_call.1} parent=43 // pred_region
              // Predicated region
              $region60: #{tpu_custom_call.1} parent=47 // pred_check
                _
              $region61: #{tpu_custom_call.1} parent=47 // pred_check_branch
                %331 = sbr.rel (0) target = $region63
              $region62: #{tpu_custom_call.1} parent=47 // pred_region
                loop: start=0, step=1, limit=1
                $region64: #{tpu_custom_call.1} parent=62 // loop_pre_header
                  _
                $region65: #{tpu_custom_call.1} parent=62 // loop_header
                  %s333 = sphi 0, %s337
                  %p334 = scmp.ge.s32.totalorder %s333, 1
                  %s338 = sphi %s282, %s282
                  %s339 = sphi %s279, %s279
                $region66: #{tpu_custom_call.1} parent=62 // loop_header_branch
                  %336 = sbr.rel (%p334) target = $region70
                $region67: #{tpu_custom_call.1} parent=62 // loop_body
                  %v340 = vld [vmem:[%s338] sm:$0xff]
                  %341 = vst [vmem:[%s339] sm:$0xff] %v340
                  %v342 = vld [vmem:[%s338 + $0x8] sm:$0xff]
                  %343 = vst [vmem:[%s339 + $0x8] sm:$0xff] %v342
                  %v344 = vld [vmem:[%s338 + $0x10] sm:$0xff]
                  %345 = vst [vmem:[%s339 + $0x10] sm:$0xff] %v344
                  %v346 = vld [vmem:[%s338 + $0x18] sm:$0xff]
                  %347 = vst [vmem:[%s339 + $0x18] sm:$0xff] %v346
                  %v348 = vld [vmem:[%s338 + $0x40] sm:$0xff]
                  %349 = vst [vmem:[%s339 + $0x20] sm:$0xff] %v348
                  %v350 = vld [vmem:[%s338 + $0x48] sm:$0xff]
                  %351 = vst [vmem:[%s339 + $0x28] sm:$0xff] %v350
                  %v352 = vld [vmem:[%s338 + $0x50] sm:$0xff]
                  %353 = vst [vmem:[%s339 + $0x30] sm:$0xff] %v352
                  %v354 = vld [vmem:[%s338 + $0x58] sm:$0xff]
                  %355 = vst [vmem:[%s339 + $0x38] sm:$0xff] %v354
                  %v356 = vld [vmem:[%s338 + $0x80] sm:$0xff]
                  %357 = vst [vmem:[%s339 + $0x40] sm:$0xff] %v356
                  %v358 = vld [vmem:[%s338 + $0x88] sm:$0xff]
                  %359 = vst [vmem:[%s339 + $0x48] sm:$0xff] %v358
                  %v360 = vld [vmem:[%s338 + $0x90] sm:$0xff]
                  %361 = vst [vmem:[%s339 + $0x50] sm:$0xff] %v360
                  %v362 = vld [vmem:[%s338 + $0x98] sm:$0xff]
                  %363 = vst [vmem:[%s339 + $0x58] sm:$0xff] %v362
                  %v364 = vld [vmem:[%s338 + $0xc0] sm:$0xff]
                  %365 = vst [vmem:[%s339 + $0x60] sm:$0xff] %v364
                  %v366 = vld [vmem:[%s338 + $0xc8] sm:$0xff]
                  %367 = vst [vmem:[%s339 + $0x68] sm:$0xff] %v366
                  %v368 = vld [vmem:[%s338 + $0xd0] sm:$0xff]
                  %369 = vst [vmem:[%s339 + $0x70] sm:$0xff] %v368
                  %v370 = vld [vmem:[%s338 + $0xd8] sm:$0xff]
                  %371 = vst [vmem:[%s339 + $0x78] sm:$0xff] %v370
                $region68: #{tpu_custom_call.1} parent=62 // loop_footer
                  %s337 = sadd.s32 1, %s333
                $region69: #{tpu_custom_call.1} parent=62 // loop_footer_branch
                  %332 = sbr.rel target = $region65
                $region70: #{tpu_custom_call.1} parent=62 // loop_exit
                  _
              $region63: #{tpu_custom_call.1} parent=47 // pred_fallthru
                _
              // Predicated region
              $region71: #{tpu_custom_call.1} parent=47 // pred_check
                _
              $region72: #{tpu_custom_call.1} parent=47 // pred_check_branch
                %373 = sbr.rel target = $region74
              $region73: #{tpu_custom_call.1} parent=47 // pred_region
                _
              $region74: #{tpu_custom_call.1} parent=47 // pred_fallthru
                _
            $region48: #{tpu_custom_call.1} parent=43 // pred_fallthru
              _
            // Predicated region
            $region49: #{tpu_custom_call.1} parent=43 // pred_check
              _
            $region50: #{tpu_custom_call.1} parent=43 // pred_check_branch
              %288 = sbr.rel target = $region52
            $region51: #{tpu_custom_call.1} parent=43 // pred_region
              loop: start=0, step=1, limit=1
              $region53: #{tpu_custom_call.1} parent=51 // loop_pre_header
                _
              $region54: #{tpu_custom_call.1} parent=51 // loop_header
                %s291 = sphi 0, %s295
                %p292 = scmp.ge.s32.totalorder %s291, 1
                %s296 = sphi %s282, %s282
                %s297 = sphi %s279, %s279
              $region55: #{tpu_custom_call.1} parent=51 // loop_header_branch
                %294 = sbr.rel (%p292) target = $region59
              $region56: #{tpu_custom_call.1} parent=51 // loop_body
                %v298 = vld [vmem:[%s296] sm:$0xff]
                %299 = vst [vmem:[%s297] sm:$0xff] %v298
                %v300 = vld [vmem:[%s296 + $0x8] sm:$0xff]
                %301 = vst [vmem:[%s297 + $0x8] sm:$0xff] %v300
                %v302 = vld [vmem:[%s296 + $0x10] sm:$0xff]
                %303 = vst [vmem:[%s297 + $0x10] sm:$0xff] %v302
                %v304 = vld [vmem:[%s296 + $0x18] sm:$0xff]
                %305 = vst [vmem:[%s297 + $0x18] sm:$0xff] %v304
                %v306 = vld [vmem:[%s296 + $0x40] sm:$0xff]
                %307 = vst [vmem:[%s297 + $0x20] sm:$0xff] %v306
                %v308 = vld [vmem:[%s296 + $0x48] sm:$0xff]
                %309 = vst [vmem:[%s297 + $0x28] sm:$0xff] %v308
                %v310 = vld [vmem:[%s296 + $0x50] sm:$0xff]
                %311 = vst [vmem:[%s297 + $0x30] sm:$0xff] %v310
                %v312 = vld [vmem:[%s296 + $0x58] sm:$0xff]
                %313 = vst [vmem:[%s297 + $0x38] sm:$0xff] %v312
                %v314 = vld [vmem:[%s296 + $0x80] sm:$0xff]
                %315 = vst [vmem:[%s297 + $0x40] sm:$0xff] %v314
                %v316 = vld [vmem:[%s296 + $0x88] sm:$0xff]
                %317 = vst [vmem:[%s297 + $0x48] sm:$0xff] %v316
                %v318 = vld [vmem:[%s296 + $0x90] sm:$0xff]
                %319 = vst [vmem:[%s297 + $0x50] sm:$0xff] %v318
                %v320 = vld [vmem:[%s296 + $0x98] sm:$0xff]
                %321 = vst [vmem:[%s297 + $0x58] sm:$0xff] %v320
                %v322 = vld [vmem:[%s296 + $0xc0] sm:$0xff]
                %323 = vst [vmem:[%s297 + $0x60] sm:$0xff] %v322
                %v324 = vld [vmem:[%s296 + $0xc8] sm:$0xff]
                %325 = vst [vmem:[%s297 + $0x68] sm:$0xff] %v324
                %v326 = vld [vmem:[%s296 + $0xd0] sm:$0xff]
                %327 = vst [vmem:[%s297 + $0x70] sm:$0xff] %v326
                %v328 = vld [vmem:[%s296 + $0xd8] sm:$0xff]
                %329 = vst [vmem:[%s297 + $0x78] sm:$0xff] %v328
              $region57: #{tpu_custom_call.1} parent=51 // loop_footer
                %s295 = sadd.s32 1, %s291
              $region58: #{tpu_custom_call.1} parent=51 // loop_footer_branch
                %290 = sbr.rel target = $region54
              $region59: #{tpu_custom_call.1} parent=51 // loop_exit
                _
            $region52: #{tpu_custom_call.1} parent=43 // pred_fallthru
              _
          $region44: #{tpu_custom_call.1} parent=39 // pred_fallthru
            _
          %374 = vnop
        $region40: #{tpu_custom_call.1} parent=31 // pred_fallthru
          _
        // Predicated region
        $region75: #{tpu_custom_call.1} parent=31 // pred_check
          %p375 = pneg %p156
        $region76: #{tpu_custom_call.1} parent=31 // pred_check_branch
          %377 = sbr.rel (%p375) target = $region78
        $region77: #{tpu_custom_call.1} parent=31 // pred_region
          %s378 = smul.u32 4, %s21
          %p379 = scmp.lt.s32.totalorder %s378, 7
          %s380 = scalar_select %p379, %s378, 7
          %s381 = smul.addr %s380, 8
          %s382 = scalar_lea.vmem %s5, %s381
          %s383 = smul.u32 4, %s21
        $region78: #{tpu_custom_call.1} parent=31 // pred_fallthru
          _
      $region32: #{tpu_custom_call.1} parent=5 // pred_fallthru
        _
      %p384 = scmp.le.s32.totalorder 1, %s21
      %p385 = scmp.lt.s32.totalorder %s21, 3
      %p386 = pnand %p384, %p385
      %p387 = pneg %p386
      // Predicated region
      $region79: #{tpu_custom_call.1} parent=5 // pred_check
        _
      $region80: #{tpu_custom_call.1} parent=5 // pred_check_branch
        %389 = sbr.rel (%p386) target = $region82
      $region81: #{tpu_custom_call.1} parent=5 // pred_region
        %s390 = ssub.s32 %s21, 1
        %s391 = sand.u32 %s102, 1
        %s392 = sand.u32 %s102, 1
        %s393 = smul.addr %s392, 128
        %s394 = scalar_lea.vmem [#allocation2], %s393
        // Predicated region
        $region83: #{tpu_custom_call.1} parent=81 // pred_check
          %p395 = pneg %p115
        $region84: #{tpu_custom_call.1} parent=81 // pred_check_branch
          %397 = sbr.rel (%p395) target = $region86
        $region85: #{tpu_custom_call.1} parent=81 // pred_region
          _
        $region86: #{tpu_custom_call.1} parent=81 // pred_fallthru
          _
        %p398 = scmp.lt.s32.totalorder %s26, 1
        %s399 = scalar_select %p398, %s26, 1
        %s400 = smul.addr %s399, 8
        %s401 = scalar_lea.vmem %s0, %s400
        %p402 = pneg %p47
        %p403 = pneg %p44
        %p404 = pneg %p68
        %p405 = pneg %p65
        %p406 = pneg %p89
        %p407 = pneg %p86
        %s408 = sand.u32 %s102, 1
        %s409 = sand.u32 %s102, 1
        %s410 = smul.addr %s409, 128
        %s411 = scalar_lea.vmem [#allocation2], %s410
        %p412 = pneg %p115
        %p413 = pneg %p112
        %p414 = pneg %p136
        %p415 = pneg %p133
        %s416 = smul.u32 4, %s26
        %p417 = scmp.lt.s32.totalorder %s416, 7
        %s418 = scalar_select %p417, %s416, 7
        %s419 = smul.addr %s418, 8
        %s420 = scalar_lea.vmem %s5, %s419
        %p421 = pneg %p162
        %p422 = pneg %p159
        %p423 = pneg %p183
        %p424 = pneg %p180
        %p425 = pneg %p209
        %p426 = pneg %p206
        %s427 = sand.u32 %s196, 1
        %s428 = scalar_lea.sflag [#allocation4], %s427
        %s429 = sand.u32 %s196, 1
        %s430 = smul.addr %s429, 32
        %s431 = scalar_lea.vmem [#allocation3], %s430
        %p432 = pneg %p235
        %p433 = pneg %p232
        %s434 = sand.u32 %s222, 1
        %s435 = scalar_lea.sflag [#allocation6], %s434
        %s436 = sand.u32 %s222, 1
        %s437 = smul.addr %s436, 32
        %s438 = scalar_lea.vmem [#allocation5], %s437
        %p439 = scmp.lt.s32.totalorder %s26, 1
        %s440 = scalar_select %p439, %s26, 1
        %s441 = smul.addr %s440, 8
        %s442 = scalar_lea.vmem %s0, %s441
        %s443 = smul.u32 4, %s26
        %s444 = smul.u32 4, %s26
        %p445 = scmp.lt.s32.totalorder %s444, 7
        %s446 = scalar_select %p445, %s444, 7
        %s447 = smul.addr %s446, 8
        %s448 = scalar_lea.vmem %s5, %s447
        %s449 = smul.u32 4, %s26
        %s450 = smul.u32 4, %s26
        %s451 = smul.u32 4, %s26
        %v452 = vld [vmem:[%s442] sm:$0xff]
        %v453 = vunpack.c.0.s8 %v452
        %v454 = vunpack.c.1.s8 %v452
        %v455 = vunpack.c.2.s8 %v452
        %v456 = vunpack.c.3.s8 %v452
        %v457 = vcvt.s32.f32 %v453
        %v458 = vcvt.s32.f32 %v454
        %v459 = vcvt.s32.f32 %v455
        %v460 = vcvt.s32.f32 %v456
        %vm461 = vcmp.gt.f32.partialorder %v457, 0.0
        %vm462 = vcmp.gt.f32.partialorder %v458, 0.0
        %vm463 = vcmp.gt.f32.partialorder %v459, 0.0
        %vm464 = vcmp.gt.f32.partialorder %v460, 0.0
        %v465 = vld [vmem:[%s448] sm:$0xff]
        %v466 = vld [vmem:[%s448 + $0x8] sm:$0xff]
        %v467 = vld [vmem:[%s448 + $0x10] sm:$0xff]
        %v468 = vld [vmem:[%s448 + $0x18] sm:$0xff]
        %v469 = vld [vmem:[%s4] sm:$0x1]
        %471 = vset.pattern.permute.xlu0 0
        %472 = vperm.xlu0 %471, %v465
        %v473 = vpop.permute.xlu0 %472
        %476 = vset.pattern.permute.xlu0 0
        %477 = vperm.xlu0 %476, %v466
        %v478 = vpop.permute.xlu0 %477
        %481 = vset.pattern.permute.xlu0 0
        %482 = vperm.xlu0 %481, %v467
        %v483 = vpop.permute.xlu0 %482
        %486 = vset.pattern.permute.xlu0 0
        %487 = vperm.xlu0 %486, %v468
        %v488 = vpop.permute.xlu0 %487
        %v491 = vlaneseq
        %v492 = vshrl.u32 %v491, 7
        %v493 = vsub.s32 0, %v492
        %v494 = vrot.slane %v469, %v493
        %v496 = vmul.f32 %v473, %v494
        %v497 = vmul.f32 %v478, %v494
        %v498 = vmul.f32 %v483, %v494
        %v499 = vmul.f32 %v488, %v494
        %v500 = vadd.f32 %v496, 1.0
        %v501 = vadd.f32 %v497, 1.0
        %v502 = vadd.f32 %v498, 1.0
        %v503 = vadd.f32 %v499, 1.0
        %v504 = vrcp.pop %v500
        %v505 = vrcp.pop %v501
        %v506 = vrcp.pop %v502
        %v507 = vrcp.pop %v503
        %vm508 = vcmask 523264
        %509 = vst.msk [vmem:[%s438] sm:$0xff] %vm508, %v504
        %510 = vst.msk [vmem:[%s438 + $0x8] sm:$0xff] %vm508, %v505
        %511 = vst.msk [vmem:[%s438 + $0x10] sm:$0xff] %vm508, %v506
        %512 = vst.msk [vmem:[%s438 + $0x18] sm:$0xff] %vm508, %v507
        %v513 = vsub.f32 1.0, %v504
        %v514 = vsub.f32 1.0, %v505
        %v515 = vsub.f32 1.0, %v506
        %v516 = vsub.f32 1.0, %v507
        %v517 = vld [vmem:[%s2] sm:$0x1]
        %v518 = vld [vmem:[%s394] sm:$0xff]
        %v519 = vld [vmem:[%s394 + $0x8] sm:$0xff]
        %v520 = vld [vmem:[%s394 + $0x10] sm:$0xff]
        %v521 = vld [vmem:[%s394 + $0x18] sm:$0xff]
        %523 = vset.pattern.permute.xlu0 0
        %524 = vperm.xlu0 %523, %v518
        %v525 = vpop.permute.xlu0 %524
        %528 = vset.pattern.permute.xlu0 0
        %529 = vperm.xlu0 %528, %v519
        %v530 = vpop.permute.xlu0 %529
        %533 = vset.pattern.permute.xlu0 0
        %534 = vperm.xlu0 %533, %v520
        %v535 = vpop.permute.xlu0 %534
        %538 = vset.pattern.permute.xlu0 0
        %539 = vperm.xlu0 %538, %v521
        %v540 = vpop.permute.xlu0 %539
        %v543 = vlaneseq
        %v544 = vshrl.u32 %v543, 7
        %v545 = vsub.s32 0, %v544
        %v546 = vrot.slane %v517, %v545
        %v548 = vadd.f32 %v525, %v546
        %v549 = vadd.f32 %v530, %v546
        %v550 = vadd.f32 %v535, %v546
        %v551 = vadd.f32 %v540, %v546
        %vm552 = vcmp.ge.f32.partialorder %v548, 0.0
        %vm553 = vcmp.ge.f32.partialorder %v549, 0.0
        %vm554 = vcmp.ge.f32.partialorder %v550, 0.0
        %vm555 = vcmp.ge.f32.partialorder %v551, 0.0
        %v556 = vmul.f32 %v548, 0.2
        %v557 = vmul.f32 %v549, 0.2
        %v558 = vmul.f32 %v550, 0.2
        %v559 = vmul.f32 %v551, 0.2
        %v560 = vsel %vm552, %v548, %v556
        %v561 = vsel %vm553, %v549, %v557
        %v562 = vsel %vm554, %v550, %v558
        %v563 = vsel %vm555, %v551, %v559
        %v564 = vsel %vm461, %v560, -1e+30
        %v565 = vsel %vm462, %v561, -1e+30
        %v566 = vsel %vm463, %v562, -1e+30
        %v567 = vsel %vm464, %v563, -1e+30
        %v568 = vsel %vm508, %v564, -inf
        %569 = vmax.xlane.f32.xlu0 %v568
        %v570 = vpop.xlane.xlu0 %569
        %v571 = vsel %vm508, %v565, -inf
        %572 = vmax.xlane.f32.xlu0 %v571
        %v573 = vpop.xlane.xlu0 %572
        %v574 = vsel %vm508, %v566, -inf
        %575 = vmax.xlane.f32.xlu0 %v574
        %v576 = vpop.xlane.xlu0 %575
        %v577 = vsel %vm508, %v567, -inf
        %578 = vmax.xlane.f32.xlu0 %v577
        %v579 = vpop.xlane.xlu0 %578
        %v580 = vsub.f32 %v564, %v570
        %v581 = vsub.f32 %v565, %v573
        %v582 = vsub.f32 %v566, %v576
        %v583 = vsub.f32 %v567, %v579
        %v584 = vmul.f32 %v580, 1.442695
        %v585 = vpow.pop %v584
        %v586 = vmul.f32 %v581, 1.442695
        %v587 = vpow.pop %v586
        %v588 = vmul.f32 %v582, 1.442695
        %v589 = vpow.pop %v588
        %v590 = vmul.f32 %v583, 1.442695
        %v591 = vpow.pop %v590
        %v592 = vsel %vm508, %v585, 0.0
        %593 = vadd.xlane.f32.xlu0 %v592
        %v594 = vpop.xlane.xlu0 %593
        %v595 = vsel %vm508, %v587, 0.0
        %596 = vadd.xlane.f32.xlu0 %v595
        %v597 = vpop.xlane.xlu0 %596
        %v598 = vsel %vm508, %v589, 0.0
        %599 = vadd.xlane.f32.xlu0 %v598
        %v600 = vpop.xlane.xlu0 %599
        %v601 = vsel %vm508, %v591, 0.0
        %602 = vadd.xlane.f32.xlu0 %v601
        %v603 = vpop.xlane.xlu0 %602
        %v604 = vmax.f32 %v594, 1e-30
        %v605 = vmax.f32 %v597, 1e-30
        %v606 = vmax.f32 %v600, 1e-30
        %v607 = vmax.f32 %v603, 1e-30
        %v608 = vrcp.pop %v604
        %v609 = vrcp.pop %v605
        %v610 = vrcp.pop %v606
        %v611 = vrcp.pop %v607
        %v612 = vmul.f32 %v585, %v608
        %v613 = vmul.f32 %v587, %v609
        %v614 = vmul.f32 %v589, %v610
        %v615 = vmul.f32 %v591, %v611
        %v616 = vmul.f32 %v612, %v504
        %v617 = vmul.f32 %v613, %v505
        %v618 = vmul.f32 %v614, %v506
        %v619 = vmul.f32 %v615, %v507
        %v620 = vld [vmem:[%s1] sm:$0xff]
        %v621 = vld [vmem:[%s1 + $0x8] sm:$0xff]
        %v622 = vld [vmem:[%s1 + $0x10] sm:$0xff]
        %v623 = vld [vmem:[%s1 + $0x18] sm:$0xff]
        %v624 = vld [vmem:[%s1 + $0x20] sm:$0xff]
        %v625 = vld [vmem:[%s1 + $0x28] sm:$0xff]
        %v626 = vld [vmem:[%s1 + $0x30] sm:$0xff]
        %v627 = vld [vmem:[%s1 + $0x38] sm:$0xff]
        %v629 = vsel %vm508, %v616, 0
        %v632 = vsel %vm508, %v617, 0
        %v635 = vsel %vm508, %v618, 0
        %v638 = vsel %vm508, %v619, 0
        %640 = vmatprep.subr.mxu0 0.0
        %641 = vmatpush1.msra.mxu0 %v620
        %642 = vmatprep.subr.mxu0 0.0
        %643 = vmatpush1.msra.mxu0 %v621
        %644 = vmatprep.subr.mxu0 0.0
        %645 = vmatpush1.msra.mxu0 %v622
        %646 = vmatprep.subr.mxu0 0.0
        %647 = vmatpush1.msra.mxu0 %v623
        %648 = vmatprep.subr.mxu0 0.0
        %649 = vmatpush1.msra.mxu0 %v624
        %650 = vmatprep.subr.mxu0 0.0
        %651 = vmatpush1.msra.mxu0 %v625
        %652 = vmatprep.subr.mxu0 0.0
        %653 = vmatpush1.msra.mxu0 %v626
        %654 = vmatprep.subr.mxu0 0.0
        %655 = vmatpush1.msra.mxu0 %v627
        %656 = vmatprep.subr.mxu0 0.0
        %657 = vmatpush1.msra.mxu0 0.0
        %658 = vmatprep.subr.mxu0 0.0
        %659 = vmatpush1.msra.mxu0 0.0
        %660 = vmatprep.subr.mxu0 0.0
        %661 = vmatpush1.msra.mxu0 0.0
        %662 = vmatprep.subr.mxu0 0.0
        %663 = vmatpush1.msra.mxu0 0.0
        %664 = vmatprep.subr.mxu0 0.0
        %665 = vmatpush1.msra.mxu0 0.0
        %666 = vmatprep.subr.mxu0 0.0
        %667 = vmatpush1.msra.mxu0 0.0
        %668 = vmatprep.subr.mxu0 0.0
        %669 = vmatpush1.msra.mxu0 0.0
        %670 = vmatprep.subr.mxu0 0.0
        %671 = vmatpush1.msra.mxu0 0.0
        %672 = vmatprep.subr.mxu0 0.0
        %673 = vmatpush1.msra.mxu0 0.0
        %674 = vmatprep.subr.mxu0 0.0
        %675 = vmatpush1.msra.mxu0 0.0
        %676 = vmatprep.subr.mxu0 0.0
        %677 = vmatpush1.msra.mxu0 0.0
        %678 = vmatprep.subr.mxu0 0.0
        %679 = vmatpush1.msra.mxu0 0.0
        %680 = vmatprep.subr.mxu0 0.0
        %681 = vmatpush1.msra.mxu0 0.0
        %682 = vmatprep.subr.mxu0 0.0
        %683 = vmatpush1.msra.mxu0 0.0
        %684 = vmatprep.subr.mxu0 0.0
        %685 = vmatpush1.msra.mxu0 0.0
        %686 = vmatprep.subr.mxu0 0.0
        %687 = vmatpush1.msra.mxu0 0.0
        %688 = vmatprep.subr.mxu0 0.0
        %689 = vmatpush1.msra.mxu0 0.0
        %690 = vmatprep.subr.mxu0 0.0
        %691 = vmatpush1.msra.mxu0 0.0
        %692 = vmatprep.subr.mxu0 0.0
        %693 = vmatpush1.msra.mxu0 0.0
        %694 = vmatprep.subr.mxu0 0.0
        %695 = vmatpush1.msra.mxu0 0.0
        %696 = vmatprep.subr.mxu0 0.0
        %697 = vmatpush1.msra.mxu0 0.0
        %698 = vmatprep.subr.mxu0 0.0
        %699 = vmatpush1.msra.mxu0 0.0
        %700 = vmatprep.subr.mxu0 0.0
        %701 = vmatpush1.msra.mxu0 0.0
        %702 = vmatprep.subr.mxu0 0.0
        %703 = vmatpush1.msra.mxu0 0.0
        %704 = vmatprep.mubr.f32.mxu0 0.0
        %705 = vmatmul.mubr.f32.gmra.mrb[0].mxu0 %v629
        %v706 = vpop.f32.mrb[0].mxu0
        %v707 = vadd.f32 0.0, %v706
        %v708 = vpop.f32.mrb[0].mxu0
        %709 = vmatprep.mubr.f32.mxu0 0.0
        %710 = vmatmul.mubr.f32.gmra.mrb[0].mxu0 %v632
        %v711 = vpop.f32.mrb[0].mxu0
        %v712 = vadd.f32 0.0, %v711
        %v713 = vpop.f32.mrb[0].mxu0
        %714 = vmatprep.mubr.f32.mxu0 0.0
        %715 = vmatmul.mubr.f32.gmra.mrb[0].mxu0 %v635
        %v716 = vpop.f32.mrb[0].mxu0
        %v717 = vadd.f32 0.0, %v716
        %v718 = vpop.f32.mrb[0].mxu0
        %719 = vmatprep.mubr.f32.mxu0 0.0
        %720 = vmatmul.mubr.f32.gmra.mrb[0].mxu0 %v638
        %v721 = vpop.f32.mrb[0].mxu0
        %v722 = vadd.f32 0.0, %v721
        %v723 = vpop.f32.mrb[0].mxu0
        %724 = vdwg.mxu0
        %s725 = scalar_lea.vmem %s2, 1
        %v726 = vld [vmem:[%s725] sm:$0x1]
        %s727 = scalar_lea.vmem %s394, 32 [#allocation2]
        %v728 = vld [vmem:[%s727] sm:$0xff]
        %v729 = vld [vmem:[%s727 + $0x8] sm:$0xff]
        %v730 = vld [vmem:[%s727 + $0x10] sm:$0xff]
        %v731 = vld [vmem:[%s727 + $0x18] sm:$0xff]
        %733 = vset.pattern.permute.xlu0 0
        %734 = vperm.xlu0 %733, %v728
        %v735 = vpop.permute.xlu0 %734
        %738 = vset.pattern.permute.xlu0 0
        %739 = vperm.xlu0 %738, %v729
        %v740 = vpop.permute.xlu0 %739
        %743 = vset.pattern.permute.xlu0 0
        %744 = vperm.xlu0 %743, %v730
        %v745 = vpop.permute.xlu0 %744
        %748 = vset.pattern.permute.xlu0 0
        %749 = vperm.xlu0 %748, %v731
        %v750 = vpop.permute.xlu0 %749
        %v753 = vlaneseq
        %v754 = vshrl.u32 %v753, 7
        %v755 = vsub.s32 0, %v754
        %v756 = vrot.slane %v726, %v755
        %v758 = vadd.f32 %v735, %v756
        %v759 = vadd.f32 %v740, %v756
        %v760 = vadd.f32 %v745, %v756
        %v761 = vadd.f32 %v750, %v756
        %vm762 = vcmp.ge.f32.partialorder %v758, 0.0
        %vm763 = vcmp.ge.f32.partialorder %v759, 0.0
        %vm764 = vcmp.ge.f32.partialorder %v760, 0.0
        %vm765 = vcmp.ge.f32.partialorder %v761, 0.0
        %v766 = vmul.f32 %v758, 0.2
        %v767 = vmul.f32 %v759, 0.2
        %v768 = vmul.f32 %v760, 0.2
        %v769 = vmul.f32 %v761, 0.2
        %v770 = vsel %vm762, %v758, %v766
        %v771 = vsel %vm763, %v759, %v767
        %v772 = vsel %vm764, %v760, %v768
        %v773 = vsel %vm765, %v761, %v769
        %v774 = vsel %vm461, %v770, -1e+30
        %v775 = vsel %vm462, %v771, -1e+30
        %v776 = vsel %vm463, %v772, -1e+30
        %v777 = vsel %vm464, %v773, -1e+30
        %v778 = vsel %vm508, %v774, -inf
        %779 = vmax.xlane.f32.xlu0 %v778
        %v780 = vpop.xlane.xlu0 %779
        %v781 = vsel %vm508, %v775, -inf
        %782 = vmax.xlane.f32.xlu0 %v781
        %v783 = vpop.xlane.xlu0 %782
        %v784 = vsel %vm508, %v776, -inf
        %785 = vmax.xlane.f32.xlu0 %v784
        %v786 = vpop.xlane.xlu0 %785
        %v787 = vsel %vm508, %v777, -inf
        %788 = vmax.xlane.f32.xlu0 %v787
        %v789 = vpop.xlane.xlu0 %788
        %v790 = vsub.f32 %v774, %v780
        %v791 = vsub.f32 %v775, %v783
        %v792 = vsub.f32 %v776, %v786
        %v793 = vsub.f32 %v777, %v789
        %v794 = vmul.f32 %v790, 1.442695
        %v795 = vpow.pop %v794
        %v796 = vmul.f32 %v791, 1.442695
        %v797 = vpow.pop %v796
        %v798 = vmul.f32 %v792, 1.442695
        %v799 = vpow.pop %v798
        %v800 = vmul.f32 %v793, 1.442695
        %v801 = vpow.pop %v800
        %v802 = vsel %vm508, %v795, 0.0
        %803 = vadd.xlane.f32.xlu0 %v802
        %v804 = vpop.xlane.xlu0 %803
        %v805 = vsel %vm508, %v797, 0.0
        %806 = vadd.xlane.f32.xlu0 %v805
        %v807 = vpop.xlane.xlu0 %806
        %v808 = vsel %vm508, %v799, 0.0
        %809 = vadd.xlane.f32.xlu0 %v808
        %v810 = vpop.xlane.xlu0 %809
        %v811 = vsel %vm508, %v801, 0.0
        %812 = vadd.xlane.f32.xlu0 %v811
        %v813 = vpop.xlane.xlu0 %812
        %v814 = vmax.f32 %v804, 1e-30
        %v815 = vmax.f32 %v807, 1e-30
        %v816 = vmax.f32 %v810, 1e-30
        %v817 = vmax.f32 %v813, 1e-30
        %v818 = vrcp.pop %v814
        %v819 = vrcp.pop %v815
        %v820 = vrcp.pop %v816
        %v821 = vrcp.pop %v817
        %v822 = vmul.f32 %v795, %v818
        %v823 = vmul.f32 %v797, %v819
        %v824 = vmul.f32 %v799, %v820
        %v825 = vmul.f32 %v801, %v821
        %v826 = vmul.f32 %v822, %v504
        %v827 = vmul.f32 %v823, %v505
        %v828 = vmul.f32 %v824, %v506
        %v829 = vmul.f32 %v825, %v507
        %s830 = scalar_lea.vmem %s1, 64
        %v831 = vld [vmem:[%s830] sm:$0xff]
        %v832 = vld [vmem:[%s830 + $0x8] sm:$0xff]
        %v833 = vld [vmem:[%s830 + $0x10] sm:$0xff]
        %v834 = vld [vmem:[%s830 + $0x18] sm:$0xff]
        %v835 = vld [vmem:[%s830 + $0x20] sm:$0xff]
        %v836 = vld [vmem:[%s830 + $0x28] sm:$0xff]
        %v837 = vld [vmem:[%s830 + $0x30] sm:$0xff]
        %v838 = vld [vmem:[%s830 + $0x38] sm:$0xff]
        %v840 = vsel %vm508, %v826, 0
        %v843 = vsel %vm508, %v827, 0
        %v846 = vsel %vm508, %v828, 0
        %v849 = vsel %vm508, %v829, 0
        %851 = vmatprep.subr.mxu0 0.0
        %852 = vmatpush1.msra.mxu0 %v831
        %853 = vmatprep.subr.mxu0 0.0
        %854 = vmatpush1.msra.mxu0 %v832
        %855 = vmatprep.subr.mxu0 0.0
        %856 = vmatpush1.msra.mxu0 %v833
        %857 = vmatprep.subr.mxu0 0.0
        %858 = vmatpush1.msra.mxu0 %v834
        %859 = vmatprep.subr.mxu0 0.0
        %860 = vmatpush1.msra.mxu0 %v835
        %861 = vmatprep.subr.mxu0 0.0
        %862 = vmatpush1.msra.mxu0 %v836
        %863 = vmatprep.subr.mxu0 0.0
        %864 = vmatpush1.msra.mxu0 %v837
        %865 = vmatprep.subr.mxu0 0.0
        %866 = vmatpush1.msra.mxu0 %v838
        %867 = vmatprep.subr.mxu0 0.0
        %868 = vmatpush1.msra.mxu0 0.0
        %869 = vmatprep.subr.mxu0 0.0
        %870 = vmatpush1.msra.mxu0 0.0
        %871 = vmatprep.subr.mxu0 0.0
        %872 = vmatpush1.msra.mxu0 0.0
        %873 = vmatprep.subr.mxu0 0.0
        %874 = vmatpush1.msra.mxu0 0.0
        %875 = vmatprep.subr.mxu0 0.0
        %876 = vmatpush1.msra.mxu0 0.0
        %877 = vmatprep.subr.mxu0 0.0
        %878 = vmatpush1.msra.mxu0 0.0
        %879 = vmatprep.subr.mxu0 0.0
        %880 = vmatpush1.msra.mxu0 0.0
        %881 = vmatprep.subr.mxu0 0.0
        %882 = vmatpush1.msra.mxu0 0.0
        %883 = vmatprep.subr.mxu0 0.0
        %884 = vmatpush1.msra.mxu0 0.0
        %885 = vmatprep.subr.mxu0 0.0
        %886 = vmatpush1.msra.mxu0 0.0
        %887 = vmatprep.subr.mxu0 0.0
        %888 = vmatpush1.msra.mxu0 0.0
        %889 = vmatprep.subr.mxu0 0.0
        %890 = vmatpush1.msra.mxu0 0.0
        %891 = vmatprep.subr.mxu0 0.0
        %892 = vmatpush1.msra.mxu0 0.0
        %893 = vmatprep.subr.mxu0 0.0
        %894 = vmatpush1.msra.mxu0 0.0
        %895 = vmatprep.subr.mxu0 0.0
        %896 = vmatpush1.msra.mxu0 0.0
        %897 = vmatprep.subr.mxu0 0.0
        %898 = vmatpush1.msra.mxu0 0.0
        %899 = vmatprep.subr.mxu0 0.0
        %900 = vmatpush1.msra.mxu0 0.0
        %901 = vmatprep.subr.mxu0 0.0
        %902 = vmatpush1.msra.mxu0 0.0
        %903 = vmatprep.subr.mxu0 0.0
        %904 = vmatpush1.msra.mxu0 0.0
        %905 = vmatprep.subr.mxu0 0.0
        %906 = vmatpush1.msra.mxu0 0.0
        %907 = vmatprep.subr.mxu0 0.0
        %908 = vmatpush1.msra.mxu0 0.0
        %909 = vmatprep.subr.mxu0 0.0
        %910 = vmatpush1.msra.mxu0 0.0
        %911 = vmatprep.subr.mxu0 0.0
        %912 = vmatpush1.msra.mxu0 0.0
        %913 = vmatprep.subr.mxu0 0.0
        %914 = vmatpush1.msra.mxu0 0.0
        %915 = vmatprep.mubr.f32.mxu0 0.0
        %916 = vmatmul.mubr.f32.gmra.mrb[0].mxu0 %v840
        %v917 = vpop.f32.mrb[0].mxu0
        %v918 = vadd.f32 0.0, %v917
        %v919 = vpop.f32.mrb[0].mxu0
        %920 = vmatprep.mubr.f32.mxu0 0.0
        %921 = vmatmul.mubr.f32.gmra.mrb[0].mxu0 %v843
        %v922 = vpop.f32.mrb[0].mxu0
        %v923 = vadd.f32 0.0, %v922
        %v924 = vpop.f32.mrb[0].mxu0
        %925 = vmatprep.mubr.f32.mxu0 0.0
        %926 = vmatmul.mubr.f32.gmra.mrb[0].mxu0 %v846
        %v927 = vpop.f32.mrb[0].mxu0
        %v928 = vadd.f32 0.0, %v927
        %v929 = vpop.f32.mrb[0].mxu0
        %930 = vmatprep.mubr.f32.mxu0 0.0
        %931 = vmatmul.mubr.f32.gmra.mrb[0].mxu0 %v849
        %v932 = vpop.f32.mrb[0].mxu0
        %v933 = vadd.f32 0.0, %v932
        %v934 = vpop.f32.mrb[0].mxu0
        %935 = vdwg.mxu0
        %s936 = scalar_lea.vmem %s2, 2
        %v937 = vld [vmem:[%s936] sm:$0x1]
        %s938 = scalar_lea.vmem %s394, 64 [#allocation2]
        %v939 = vld [vmem:[%s938] sm:$0xff]
        %v940 = vld [vmem:[%s938 + $0x8] sm:$0xff]
        %v941 = vld [vmem:[%s938 + $0x10] sm:$0xff]
        %v942 = vld [vmem:[%s938 + $0x18] sm:$0xff]
        %944 = vset.pattern.permute.xlu0 0
        %945 = vperm.xlu0 %944, %v939
        %v946 = vpop.permute.xlu0 %945
        %949 = vset.pattern.permute.xlu0 0
        %950 = vperm.xlu0 %949, %v940
        %v951 = vpop.permute.xlu0 %950
        %954 = vset.pattern.permute.xlu0 0
        %955 = vperm.xlu0 %954, %v941
        %v956 = vpop.permute.xlu0 %955
        %959 = vset.pattern.permute.xlu0 0
        %960 = vperm.xlu0 %959, %v942
        %v961 = vpop.permute.xlu0 %960
        %v964 = vlaneseq
        %v965 = vshrl.u32 %v964, 7
        %v966 = vsub.s32 0, %v965
        %v967 = vrot.slane %v937, %v966
        %v969 = vadd.f32 %v946, %v967
        %v970 = vadd.f32 %v951, %v967
        %v971 = vadd.f32 %v956, %v967
        %v972 = vadd.f32 %v961, %v967
        %vm973 = vcmp.ge.f32.partialorder %v969, 0.0
        %vm974 = vcmp.ge.f32.partialorder %v970, 0.0
        %vm975 = vcmp.ge.f32.partialorder %v971, 0.0
        %vm976 = vcmp.ge.f32.partialorder %v972, 0.0
        %v977 = vmul.f32 %v969, 0.2
        %v978 = vmul.f32 %v970, 0.2
        %v979 = vmul.f32 %v971, 0.2
        %v980 = vmul.f32 %v972, 0.2
        %v981 = vsel %vm973, %v969, %v977
        %v982 = vsel %vm974, %v970, %v978
        %v983 = vsel %vm975, %v971, %v979
        %v984 = vsel %vm976, %v972, %v980
        %v985 = vsub.f32 0.0, %v981
        %v986 = vsub.f32 0.0, %v982
        %v987 = vsub.f32 0.0, %v983
        %v988 = vsub.f32 0.0, %v984
        %v989 = vsel %vm461, %v985, -1e+30
        %v990 = vsel %vm462, %v986, -1e+30
        %v991 = vsel %vm463, %v987, -1e+30
        %v992 = vsel %vm464, %v988, -1e+30
        %v993 = vsel %vm508, %v989, -inf
        %994 = vmax.xlane.f32.xlu0 %v993
        %v995 = vpop.xlane.xlu0 %994
        %v996 = vsel %vm508, %v990, -inf
        %997 = vmax.xlane.f32.xlu0 %v996
        %v998 = vpop.xlane.xlu0 %997
        %v999 = vsel %vm508, %v991, -inf
        %1000 = vmax.xlane.f32.xlu0 %v999
        %v1001 = vpop.xlane.xlu0 %1000
        %v1002 = vsel %vm508, %v992, -inf
        %1003 = vmax.xlane.f32.xlu0 %v1002
        %v1004 = vpop.xlane.xlu0 %1003
        %v1005 = vsub.f32 %v989, %v995
        %v1006 = vsub.f32 %v990, %v998
        %v1007 = vsub.f32 %v991, %v1001
        %v1008 = vsub.f32 %v992, %v1004
        %v1009 = vmul.f32 %v1005, 1.442695
        %v1010 = vpow.pop %v1009
        %v1011 = vmul.f32 %v1006, 1.442695
        %v1012 = vpow.pop %v1011
        %v1013 = vmul.f32 %v1007, 1.442695
        %v1014 = vpow.pop %v1013
        %v1015 = vmul.f32 %v1008, 1.442695
        %v1016 = vpow.pop %v1015
        %v1017 = vsel %vm508, %v1010, 0.0
        %1018 = vadd.xlane.f32.xlu0 %v1017
        %v1019 = vpop.xlane.xlu0 %1018
        %v1020 = vsel %vm508, %v1012, 0.0
        %1021 = vadd.xlane.f32.xlu0 %v1020
        %v1022 = vpop.xlane.xlu0 %1021
        %v1023 = vsel %vm508, %v1014, 0.0
        %1024 = vadd.xlane.f32.xlu0 %v1023
        %v1025 = vpop.xlane.xlu0 %1024
        %v1026 = vsel %vm508, %v1016, 0.0
        %1027 = vadd.xlane.f32.xlu0 %v1026
        %v1028 = vpop.xlane.xlu0 %1027
        %v1029 = vmax.f32 %v1019, 1e-30
        %v1030 = vmax.f32 %v1022, 1e-30
        %v1031 = vmax.f32 %v1025, 1e-30
        %v1032 = vmax.f32 %v1028, 1e-30
        %v1033 = vrcp.pop %v1029
        %v1034 = vrcp.pop %v1030
        %v1035 = vrcp.pop %v1031
        %v1036 = vrcp.pop %v1032
        %v1037 = vmul.f32 %v1010, %v1033
        %v1038 = vmul.f32 %v1012, %v1034
        %v1039 = vmul.f32 %v1014, %v1035
        %v1040 = vmul.f32 %v1016, %v1036
        %v1041 = vmul.f32 %v1037, %v513
        %v1042 = vmul.f32 %v1038, %v514
        %v1043 = vmul.f32 %v1039, %v515
        %v1044 = vmul.f32 %v1040, %v516
        %s1045 = scalar_lea.vmem %s1, 128
        %v1046 = vld [vmem:[%s1045] sm:$0xff]
        %v1047 = vld [vmem:[%s1045 + $0x8] sm:$0xff]
        %v1048 = vld [vmem:[%s1045 + $0x10] sm:$0xff]
        %v1049 = vld [vmem:[%s1045 + $0x18] sm:$0xff]
        %v1050 = vld [vmem:[%s1045 + $0x20] sm:$0xff]
        %v1051 = vld [vmem:[%s1045 + $0x28] sm:$0xff]
        %v1052 = vld [vmem:[%s1045 + $0x30] sm:$0xff]
        %v1053 = vld [vmem:[%s1045 + $0x38] sm:$0xff]
        %v1055 = vsel %vm508, %v1041, 0
        %v1058 = vsel %vm508, %v1042, 0
        %v1061 = vsel %vm508, %v1043, 0
        %v1064 = vsel %vm508, %v1044, 0
        %1066 = vmatprep.subr.mxu0 0.0
        %1067 = vmatpush1.msra.mxu0 %v1046
        %1068 = vmatprep.subr.mxu0 0.0
        %1069 = vmatpush1.msra.mxu0 %v1047
        %1070 = vmatprep.subr.mxu0 0.0
        %1071 = vmatpush1.msra.mxu0 %v1048
        %1072 = vmatprep.subr.mxu0 0.0
        %1073 = vmatpush1.msra.mxu0 %v1049
        %1074 = vmatprep.subr.mxu0 0.0
        %1075 = vmatpush1.msra.mxu0 %v1050
        %1076 = vmatprep.subr.mxu0 0.0
        %1077 = vmatpush1.msra.mxu0 %v1051
        %1078 = vmatprep.subr.mxu0 0.0
        %1079 = vmatpush1.msra.mxu0 %v1052
        %1080 = vmatprep.subr.mxu0 0.0
        %1081 = vmatpush1.msra.mxu0 %v1053
        %1082 = vmatprep.subr.mxu0 0.0
        %1083 = vmatpush1.msra.mxu0 0.0
        %1084 = vmatprep.subr.mxu0 0.0
        %1085 = vmatpush1.msra.mxu0 0.0
        %1086 = vmatprep.subr.mxu0 0.0
        %1087 = vmatpush1.msra.mxu0 0.0
        %1088 = vmatprep.subr.mxu0 0.0
        %1089 = vmatpush1.msra.mxu0 0.0
        %1090 = vmatprep.subr.mxu0 0.0
        %1091 = vmatpush1.msra.mxu0 0.0
        %1092 = vmatprep.subr.mxu0 0.0
        %1093 = vmatpush1.msra.mxu0 0.0
        %1094 = vmatprep.subr.mxu0 0.0
        %1095 = vmatpush1.msra.mxu0 0.0
        %1096 = vmatprep.subr.mxu0 0.0
        %1097 = vmatpush1.msra.mxu0 0.0
        %1098 = vmatprep.subr.mxu0 0.0
        %1099 = vmatpush1.msra.mxu0 0.0
        %1100 = vmatprep.subr.mxu0 0.0
        %1101 = vmatpush1.msra.mxu0 0.0
        %1102 = vmatprep.subr.mxu0 0.0
        %1103 = vmatpush1.msra.mxu0 0.0
        %1104 = vmatprep.subr.mxu0 0.0
        %1105 = vmatpush1.msra.mxu0 0.0
        %1106 = vmatprep.subr.mxu0 0.0
        %1107 = vmatpush1.msra.mxu0 0.0
        %1108 = vmatprep.subr.mxu0 0.0
        %1109 = vmatpush1.msra.mxu0 0.0
        %1110 = vmatprep.subr.mxu0 0.0
        %1111 = vmatpush1.msra.mxu0 0.0
        %1112 = vmatprep.subr.mxu0 0.0
        %1113 = vmatpush1.msra.mxu0 0.0
        %1114 = vmatprep.subr.mxu0 0.0
        %1115 = vmatpush1.msra.mxu0 0.0
        %1116 = vmatprep.subr.mxu0 0.0
        %1117 = vmatpush1.msra.mxu0 0.0
        %1118 = vmatprep.subr.mxu0 0.0
        %1119 = vmatpush1.msra.mxu0 0.0
        %1120 = vmatprep.subr.mxu0 0.0
        %1121 = vmatpush1.msra.mxu0 0.0
        %1122 = vmatprep.subr.mxu0 0.0
        %1123 = vmatpush1.msra.mxu0 0.0
        %1124 = vmatprep.subr.mxu0 0.0
        %1125 = vmatpush1.msra.mxu0 0.0
        %1126 = vmatprep.subr.mxu0 0.0
        %1127 = vmatpush1.msra.mxu0 0.0
        %1128 = vmatprep.subr.mxu0 0.0
        %1129 = vmatpush1.msra.mxu0 0.0
        %1130 = vmatprep.mubr.f32.mxu0 0.0
        %1131 = vmatmul.mubr.f32.gmra.mrb[0].mxu0 %v1055
        %v1132 = vpop.f32.mrb[0].mxu0
        %v1133 = vadd.f32 0.0, %v1132
        %v1134 = vpop.f32.mrb[0].mxu0
        %1135 = vmatprep.mubr.f32.mxu0 0.0
        %1136 = vmatmul.mubr.f32.gmra.mrb[0].mxu0 %v1058
        %v1137 = vpop.f32.mrb[0].mxu0
        %v1138 = vadd.f32 0.0, %v1137
        %v1139 = vpop.f32.mrb[0].mxu0
        %1140 = vmatprep.mubr.f32.mxu0 0.0
        %1141 = vmatmul.mubr.f32.gmra.mrb[0].mxu0 %v1061
        %v1142 = vpop.f32.mrb[0].mxu0
        %v1143 = vadd.f32 0.0, %v1142
        %v1144 = vpop.f32.mrb[0].mxu0
        %1145 = vmatprep.mubr.f32.mxu0 0.0
        %1146 = vmatmul.mubr.f32.gmra.mrb[0].mxu0 %v1064
        %v1147 = vpop.f32.mrb[0].mxu0
        %v1148 = vadd.f32 0.0, %v1147
        %v1149 = vpop.f32.mrb[0].mxu0
        %1150 = vdwg.mxu0
        %s1151 = scalar_lea.vmem %s2, 3
        %v1152 = vld [vmem:[%s1151] sm:$0x1]
        %s1153 = scalar_lea.vmem %s394, 96 [#allocation2]
        %v1154 = vld [vmem:[%s1153] sm:$0xff]
        %v1155 = vld [vmem:[%s1153 + $0x8] sm:$0xff]
        %v1156 = vld [vmem:[%s1153 + $0x10] sm:$0xff]
        %v1157 = vld [vmem:[%s1153 + $0x18] sm:$0xff]
        %1159 = vset.pattern.permute.xlu0 0
        %1160 = vperm.xlu0 %1159, %v1154
        %v1161 = vpop.permute.xlu0 %1160
        %1164 = vset.pattern.permute.xlu0 0
        %1165 = vperm.xlu0 %1164, %v1155
        %v1166 = vpop.permute.xlu0 %1165
        %1169 = vset.pattern.permute.xlu0 0
        %1170 = vperm.xlu0 %1169, %v1156
        %v1171 = vpop.permute.xlu0 %1170
        %1174 = vset.pattern.permute.xlu0 0
        %1175 = vperm.xlu0 %1174, %v1157
        %v1176 = vpop.permute.xlu0 %1175
        %v1179 = vlaneseq
        %v1180 = vshrl.u32 %v1179, 7
        %v1181 = vsub.s32 0, %v1180
        %v1182 = vrot.slane %v1152, %v1181
        %v1184 = vadd.f32 %v1161, %v1182
        %v1185 = vadd.f32 %v1166, %v1182
        %v1186 = vadd.f32 %v1171, %v1182
        %v1187 = vadd.f32 %v1176, %v1182
        %vm1188 = vcmp.ge.f32.partialorder %v1184, 0.0
        %vm1189 = vcmp.ge.f32.partialorder %v1185, 0.0
        %vm1190 = vcmp.ge.f32.partialorder %v1186, 0.0
        %vm1191 = vcmp.ge.f32.partialorder %v1187, 0.0
        %v1192 = vmul.f32 %v1184, 0.2
        %v1193 = vmul.f32 %v1185, 0.2
        %v1194 = vmul.f32 %v1186, 0.2
        %v1195 = vmul.f32 %v1187, 0.2
        %v1196 = vsel %vm1188, %v1184, %v1192
        %v1197 = vsel %vm1189, %v1185, %v1193
        %v1198 = vsel %vm1190, %v1186, %v1194
        %v1199 = vsel %vm1191, %v1187, %v1195
        %v1200 = vsub.f32 0.0, %v1196
        %v1201 = vsub.f32 0.0, %v1197
        %v1202 = vsub.f32 0.0, %v1198
        %v1203 = vsub.f32 0.0, %v1199
        %v1204 = vsel %vm461, %v1200, -1e+30
        %v1205 = vsel %vm462, %v1201, -1e+30
        %v1206 = vsel %vm463, %v1202, -1e+30
        %v1207 = vsel %vm464, %v1203, -1e+30
        %v1208 = vsel %vm508, %v1204, -inf
        %1209 = vmax.xlane.f32.xlu0 %v1208
        %v1210 = vpop.xlane.xlu0 %1209
        %v1211 = vsel %vm508, %v1205, -inf
        %1212 = vmax.xlane.f32.xlu0 %v1211
        %v1213 = vpop.xlane.xlu0 %1212
        %v1214 = vsel %vm508, %v1206, -inf
        %1215 = vmax.xlane.f32.xlu0 %v1214
        %v1216 = vpop.xlane.xlu0 %1215
        %v1217 = vsel %vm508, %v1207, -inf
        %1218 = vmax.xlane.f32.xlu0 %v1217
        %v1219 = vpop.xlane.xlu0 %1218
        %v1220 = vsub.f32 %v1204, %v1210
        %v1221 = vsub.f32 %v1205, %v1213
        %v1222 = vsub.f32 %v1206, %v1216
        %v1223 = vsub.f32 %v1207, %v1219
        %v1224 = vmul.f32 %v1220, 1.442695
        %v1225 = vpow.pop %v1224
        %v1226 = vmul.f32 %v1221, 1.442695
        %v1227 = vpow.pop %v1226
        %v1228 = vmul.f32 %v1222, 1.442695
        %v1229 = vpow.pop %v1228
        %v1230 = vmul.f32 %v1223, 1.442695
        %v1231 = vpow.pop %v1230
        %v1232 = vsel %vm508, %v1225, 0.0
        %1233 = vadd.xlane.f32.xlu0 %v1232
        %v1234 = vpop.xlane.xlu0 %1233
        %v1235 = vsel %vm508, %v1227, 0.0
        %1236 = vadd.xlane.f32.xlu0 %v1235
        %v1237 = vpop.xlane.xlu0 %1236
        %v1238 = vsel %vm508, %v1229, 0.0
        %1239 = vadd.xlane.f32.xlu0 %v1238
        %v1240 = vpop.xlane.xlu0 %1239
        %v1241 = vsel %vm508, %v1231, 0.0
        %1242 = vadd.xlane.f32.xlu0 %v1241
        %v1243 = vpop.xlane.xlu0 %1242
        %v1244 = vmax.f32 %v1234, 1e-30
        %v1245 = vmax.f32 %v1237, 1e-30
        %v1246 = vmax.f32 %v1240, 1e-30
        %v1247 = vmax.f32 %v1243, 1e-30
        %v1248 = vrcp.pop %v1244
        %v1249 = vrcp.pop %v1245
        %v1250 = vrcp.pop %v1246
        %v1251 = vrcp.pop %v1247
        %v1252 = vmul.f32 %v1225, %v1248
        %v1253 = vmul.f32 %v1227, %v1249
        %v1254 = vmul.f32 %v1229, %v1250
        %v1255 = vmul.f32 %v1231, %v1251
        %v1256 = vmul.f32 %v1252, %v513
        %v1257 = vmul.f32 %v1253, %v514
        %v1258 = vmul.f32 %v1254, %v515
        %v1259 = vmul.f32 %v1255, %v516
        %s1260 = scalar_lea.vmem %s1, 192
        %v1261 = vld [vmem:[%s1260] sm:$0xff]
        %v1262 = vld [vmem:[%s1260 + $0x8] sm:$0xff]
        %v1263 = vld [vmem:[%s1260 + $0x10] sm:$0xff]
        %v1264 = vld [vmem:[%s1260 + $0x18] sm:$0xff]
        %v1265 = vld [vmem:[%s1260 + $0x20] sm:$0xff]
        %v1266 = vld [vmem:[%s1260 + $0x28] sm:$0xff]
        %v1267 = vld [vmem:[%s1260 + $0x30] sm:$0xff]
        %v1268 = vld [vmem:[%s1260 + $0x38] sm:$0xff]
        %v1270 = vsel %vm508, %v1256, 0
        %v1273 = vsel %vm508, %v1257, 0
        %v1276 = vsel %vm508, %v1258, 0
        %v1279 = vsel %vm508, %v1259, 0
        %1281 = vmatprep.subr.mxu0 0.0
        %1282 = vmatpush1.msra.mxu0 %v1261
        %1283 = vmatprep.subr.mxu0 0.0
        %1284 = vmatpush1.msra.mxu0 %v1262
        %1285 = vmatprep.subr.mxu0 0.0
        %1286 = vmatpush1.msra.mxu0 %v1263
        %1287 = vmatprep.subr.mxu0 0.0
        %1288 = vmatpush1.msra.mxu0 %v1264
        %1289 = vmatprep.subr.mxu0 0.0
        %1290 = vmatpush1.msra.mxu0 %v1265
        %1291 = vmatprep.subr.mxu0 0.0
        %1292 = vmatpush1.msra.mxu0 %v1266
        %1293 = vmatprep.subr.mxu0 0.0
        %1294 = vmatpush1.msra.mxu0 %v1267
        %1295 = vmatprep.subr.mxu0 0.0
        %1296 = vmatpush1.msra.mxu0 %v1268
        %1297 = vmatprep.subr.mxu0 0.0
        %1298 = vmatpush1.msra.mxu0 0.0
        %1299 = vmatprep.subr.mxu0 0.0
        %1300 = vmatpush1.msra.mxu0 0.0
        %1301 = vmatprep.subr.mxu0 0.0
        %1302 = vmatpush1.msra.mxu0 0.0
        %1303 = vmatprep.subr.mxu0 0.0
        %1304 = vmatpush1.msra.mxu0 0.0
        %1305 = vmatprep.subr.mxu0 0.0
        %1306 = vmatpush1.msra.mxu0 0.0
        %1307 = vmatprep.subr.mxu0 0.0
        %1308 = vmatpush1.msra.mxu0 0.0
        %1309 = vmatprep.subr.mxu0 0.0
        %1310 = vmatpush1.msra.mxu0 0.0
        %1311 = vmatprep.subr.mxu0 0.0
        %1312 = vmatpush1.msra.mxu0 0.0
        %1313 = vmatprep.subr.mxu0 0.0
        %1314 = vmatpush1.msra.mxu0 0.0
        %1315 = vmatprep.subr.mxu0 0.0
        %1316 = vmatpush1.msra.mxu0 0.0
        %1317 = vmatprep.subr.mxu0 0.0
        %1318 = vmatpush1.msra.mxu0 0.0
        %1319 = vmatprep.subr.mxu0 0.0
        %1320 = vmatpush1.msra.mxu0 0.0
        %1321 = vmatprep.subr.mxu0 0.0
        %1322 = vmatpush1.msra.mxu0 0.0
        %1323 = vmatprep.subr.mxu0 0.0
        %1324 = vmatpush1.msra.mxu0 0.0
        %1325 = vmatprep.subr.mxu0 0.0
        %1326 = vmatpush1.msra.mxu0 0.0
        %1327 = vmatprep.subr.mxu0 0.0
        %1328 = vmatpush1.msra.mxu0 0.0
        %1329 = vmatprep.subr.mxu0 0.0
        %1330 = vmatpush1.msra.mxu0 0.0
        %1331 = vmatprep.subr.mxu0 0.0
        %1332 = vmatpush1.msra.mxu0 0.0
        %1333 = vmatprep.subr.mxu0 0.0
        %1334 = vmatpush1.msra.mxu0 0.0
        %1335 = vmatprep.subr.mxu0 0.0
        %1336 = vmatpush1.msra.mxu0 0.0
        %1337 = vmatprep.subr.mxu0 0.0
        %1338 = vmatpush1.msra.mxu0 0.0
        %1339 = vmatprep.subr.mxu0 0.0
        %1340 = vmatpush1.msra.mxu0 0.0
        %1341 = vmatprep.subr.mxu0 0.0
        %1342 = vmatpush1.msra.mxu0 0.0
        %1343 = vmatprep.subr.mxu0 0.0
        %1344 = vmatpush1.msra.mxu0 0.0
        %1345 = vmatprep.mubr.f32.mxu0 0.0
        %1346 = vmatmul.mubr.f32.gmra.mrb[0].mxu0 %v1270
        %v1347 = vpop.f32.mrb[0].mxu0
        %v1348 = vadd.f32 0.0, %v1347
        %v1349 = vpop.f32.mrb[0].mxu0
        %1350 = vmatprep.mubr.f32.mxu0 0.0
        %1351 = vmatmul.mubr.f32.gmra.mrb[0].mxu0 %v1273
        %v1352 = vpop.f32.mrb[0].mxu0
        %v1353 = vadd.f32 0.0, %v1352
        %v1354 = vpop.f32.mrb[0].mxu0
        %1355 = vmatprep.mubr.f32.mxu0 0.0
        %1356 = vmatmul.mubr.f32.gmra.mrb[0].mxu0 %v1276
        %v1357 = vpop.f32.mrb[0].mxu0
        %v1358 = vadd.f32 0.0, %v1357
        %v1359 = vpop.f32.mrb[0].mxu0
        %1360 = vmatprep.mubr.f32.mxu0 0.0
        %1361 = vmatmul.mubr.f32.gmra.mrb[0].mxu0 %v1279
        %v1362 = vpop.f32.mrb[0].mxu0
        %v1363 = vadd.f32 0.0, %v1362
        %v1364 = vpop.f32.mrb[0].mxu0
        %1365 = vdwg.mxu0
        %1370 = vrot.lane.b32.xlu0 %v918, 16
        %v1371 = vpop.permute.xlu0 %1370
        %1372 = vrot.lane.b32.xlu0 %v923, 16
        %v1373 = vpop.permute.xlu0 %1372
        %1374 = vrot.lane.b32.xlu0 %v928, 16
        %v1375 = vpop.permute.xlu0 %1374
        %1376 = vrot.lane.b32.xlu0 %v933, 16
        %v1377 = vpop.permute.xlu0 %1376
        %1386 = vrot.lane.b32.xlu0 %v1133, 32
        %v1387 = vpop.permute.xlu0 %1386
        %1388 = vrot.lane.b32.xlu0 %v1138, 32
        %v1389 = vpop.permute.xlu0 %1388
        %1390 = vrot.lane.b32.xlu0 %v1143, 32
        %v1391 = vpop.permute.xlu0 %1390
        %1392 = vrot.lane.b32.xlu0 %v1148, 32
        %v1393 = vpop.permute.xlu0 %1392
        %1402 = vrot.lane.b32.xlu0 %v1348, 48
        %v1403 = vpop.permute.xlu0 %1402
        %1404 = vrot.lane.b32.xlu0 %v1353, 48
        %v1405 = vpop.permute.xlu0 %1404
        %1406 = vrot.lane.b32.xlu0 %v1358, 48
        %v1407 = vpop.permute.xlu0 %1406
        %1408 = vrot.lane.b32.xlu0 %v1363, 48
        %v1409 = vpop.permute.xlu0 %1408
        %vm1414 = vcmask 130048
        %v1415 = vsel %vm1414, %v707, %v1371
        %v1416 = vsel %vm1414, %v712, %v1373
        %v1417 = vsel %vm1414, %v717, %v1375
        %v1418 = vsel %vm1414, %v722, %v1377
        %vm1419 = vcmask 261120
        %v1420 = vsel %vm1419, %v1415, %v1387
        %v1421 = vsel %vm1419, %v1416, %v1389
        %v1422 = vsel %vm1419, %v1417, %v1391
        %v1423 = vsel %vm1419, %v1418, %v1393
        %vm1424 = vcmask 392192
        %v1425 = vsel %vm1424, %v1420, %v1403
        %v1426 = vsel %vm1424, %v1421, %v1405
        %v1427 = vsel %vm1424, %v1422, %v1407
        %v1428 = vsel %vm1424, %v1423, %v1409
        %v1429 = vld [vmem:[%s6] sm:$0x1]
        %v1431 = vlaneseq
        %v1432 = vshrl.u32 %v1431, 7
        %v1433 = vsub.s32 0, %v1432
        %v1434 = vrot.slane %v1429, %v1433
        %v1436 = vadd.f32 %v1425, %v1434
        %v1437 = vadd.f32 %v1426, %v1434
        %v1438 = vadd.f32 %v1427, %v1434
        %v1439 = vadd.f32 %v1428, %v1434
        %1440 = vst.msk [vmem:[%s431] sm:$0xff] %vm508, %v1436
        %1441 = vst.msk [vmem:[%s431 + $0x8] sm:$0xff] %vm508, %v1437
        %1442 = vst.msk [vmem:[%s431 + $0x10] sm:$0xff] %vm508, %v1438
        %1443 = vst.msk [vmem:[%s431 + $0x18] sm:$0xff] %vm508, %v1439
        %s1444 = sand.u32 %s196, 1
        %s1445 = scalar_lea.sflag [#allocation4], %s1444
        %s1446 = sand.u32 %s196, 1
        %s1447 = smul.addr %s1446, 32
        %s1448 = scalar_lea.vmem [#allocation3], %s1447
        %s1449 = sand.u32 %s222, 1
        %s1450 = scalar_lea.sflag [#allocation6], %s1449
        %s1451 = sand.u32 %s222, 1
        %s1452 = smul.addr %s1451, 32
        %s1453 = scalar_lea.vmem [#allocation5], %s1452
        // Predicated region
        $region87: #{tpu_custom_call.1} parent=81 // pred_check
          %p1454 = pneg %p206
        $region88: #{tpu_custom_call.1} parent=81 // pred_check_branch
          %1456 = sbr.rel (%p1454) target = $region90
        $region89: #{tpu_custom_call.1} parent=81 // pred_region
          %s1457 = smul.u32 4, %s26
          %s1459 = ssub.s32 512, 512
          %1460 = vsyncadd %s1445, %s1459
          %s1461 = smul.addr %s1457, 128
          %s1462 = scalar_lea.hbm %s7, %s1461
          %s1463 = sshll.u32 %s1448, 4
          %s1464 = int_to_ptr.vmem [resolvable:$true] %s1463
          %1469 = dma.vmem_to_hbm [thread:$0]  %s1464, 512, %s1462, %s1445, 128, 128, 8
        $region90: #{tpu_custom_call.1} parent=81 // pred_fallthru
          _
        // Predicated region
        $region91: #{tpu_custom_call.1} parent=81 // pred_check
          %p1470 = pneg %p232
        $region92: #{tpu_custom_call.1} parent=81 // pred_check_branch
          %1472 = sbr.rel (%p1470) target = $region94
        $region93: #{tpu_custom_call.1} parent=81 // pred_region
          %s1473 = smul.u32 4, %s26
          %s1475 = ssub.s32 512, 512
          %1476 = vsyncadd %s1450, %s1475
          %s1477 = smul.addr %s1473, 128
          %s1478 = scalar_lea.hbm %s8, %s1477
          %s1479 = sshll.u32 %s1453, 4
          %s1480 = int_to_ptr.vmem [resolvable:$true] %s1479
          %1485 = dma.vmem_to_hbm [thread:$0]  %s1480, 512, %s1478, %s1450, 128, 128, 8
        $region94: #{tpu_custom_call.1} parent=81 // pred_fallthru
          _
      $region82: #{tpu_custom_call.1} parent=5 // pred_fallthru
        _
      %p1486 = scmp.le.s32.totalorder 2, %s21
      // Predicated region
      $region95: #{tpu_custom_call.1} parent=5 // pred_check
        %p1487 = pneg %p1486
      $region96: #{tpu_custom_call.1} parent=5 // pred_check_branch
        %1489 = sbr.rel (%p1487) target = $region98
      $region97: #{tpu_custom_call.1} parent=5 // pred_region
        %s1490 = ssub.s32 %s21, 2
        // Predicated region
        $region99: #{tpu_custom_call.1} parent=97 // pred_check
          %p1491 = pneg %p212
        $region100: #{tpu_custom_call.1} parent=97 // pred_check_branch
          %1493 = sbr.rel (%p1491) target = $region102
        $region101: #{tpu_custom_call.1} parent=97 // pred_region
          %s1494 = sand.u32 %s197, 1
          %s1495 = scalar_lea.sflag [#allocation4], %s1494
          %s1496 = sand.u32 %s197, 1
          %s1497 = smul.addr %s1496, 32
          %s1498 = scalar_lea.vmem [#allocation3], %s1497
          %1499 = dma.done %s1495, 512
        $region102: #{tpu_custom_call.1} parent=97 // pred_fallthru
          _
        // Predicated region
        $region103: #{tpu_custom_call.1} parent=97 // pred_check
          %p1500 = pneg %p238
        $region104: #{tpu_custom_call.1} parent=97 // pred_check_branch
          %1502 = sbr.rel (%p1500) target = $region106
        $region105: #{tpu_custom_call.1} parent=97 // pred_region
          %s1503 = sand.u32 %s223, 1
          %s1504 = scalar_lea.sflag [#allocation6], %s1503
          %s1505 = sand.u32 %s223, 1
          %s1506 = smul.addr %s1505, 32
          %s1507 = scalar_lea.vmem [#allocation5], %s1506
          %1508 = dma.done %s1504, 512
        $region106: #{tpu_custom_call.1} parent=97 // pred_fallthru
          _
      $region98: #{tpu_custom_call.1} parent=5 // pred_fallthru
        _
    $region6: #{tpu_custom_call.1} parent=1 // loop_footer
      %s25 = sadd.s32 1, %s21
    $region7: #{tpu_custom_call.1} parent=1 // loop_footer_branch
      %20 = sbr.rel target = $region3
    $region8: #{tpu_custom_call.1} parent=1 // loop_exit
      _
    %1509 = vsyncpa [#allocation4], 1
    %s1510 = scalar_lea.sflag [#allocation4], 1
    %1511 = vsyncpa %s1510, 1
    %1512 = vsyncpa [#allocation6], 1
    %s1513 = scalar_lea.sflag [#allocation6], 1
    %1514 = vsyncpa %s1513, 1

</llo_original>
